<compile_context>
chip_gen: v7x
topology: tpu7x:2x2x1
jax: 0.10.0
libtpu: 0.0.40
codegen_flags: <defaults>
</compile_context>

<pallas_src>
import functools
import math

import jax
import jax.numpy as jnp
from jax import lax
from jax.experimental import pallas as pl
from jax.experimental.pallas import tpu as pltpu


# ----------------------------------------------------------------------------
# Fused FilterBlock kernel (grid = (batch, block); all layers of one block inside)
# ----------------------------------------------------------------------------

def _filter_block_kernel(src_ref, cond_ref, pre_w_ref, pre_b_ref, conv_a_ref,
                         conv_b_ref, post_w_ref, post_b_ref, out_ref,
                         *, num_layers, filter_length):
    """One FilterBlock (pre Linear, L dilated conv layers, post Linear, residual).

    Layout: time on lanes, channels on sublanes.
      src_ref    : (1, 1, T)            Filter input (only used at block 0)
      cond_ref   : (1, C, T)            conditioning features (resident per batch)
      pre_w_ref  : (1, C, 1)            Linear(1 -> C) weight of this block
      pre_b_ref  : (1, C, 1)            Linear(1 -> C) bias
      conv_a_ref : (1, L, K, C, C) bf16 A[l, j, cout, cin] = torch_w[cout, cin, K-1-j]
      conv_b_ref : (1, L, C, 1)         conv bias
      post_w_ref : (1, C, 1)            Linear(C -> 1) weight
      post_b_ref : (1, 1, 1)            Linear(C -> 1) bias
      out_ref    : (1, 1, T)            resident across the block grid axis: carries the
                                        running block src (revisited-output accumulator)
    """
    C = cond_ref.shape[1]
    T = cond_ref.shape[2]
    K = filter_length
    blk = pl.program_id(1)

    # Initialize the carried running src from the Filter input at the first block.
    @pl.when(blk == 0)
    def _():
        out_ref[0] = src_ref[0]

    cond = cond_ref[0]                                        # (C, T), lane-dense, resident
    x = out_ref[0]                                            # (1, T)  running block src
    t1 = lax.broadcasted_iota(jnp.int32, (1, T), 1)           # small (1, T) mask iota

    # preprocess: Linear(1 -> C)
    h = pre_w_ref[0] * x + pre_b_ref[0]                       # (C, 1)*(1, T) -> (C, T)

    for layer in range(num_layers):                           # unrolled: shifts must be static
        dilation = 2 ** layer
        pad = dilation * (K - 1)

        # tap j=0 is h itself; taps j>0 are cheap XLU lane rotations.  Wrap-around frames
        # land at t < j*dilation <= pad and are zeroed by the output mask below.
        acc = jnp.dot(conv_a_ref[0, layer, 0, :, :], h.astype(jnp.bfloat16),
                      preferred_element_type=jnp.float32)     # (C, T) f32
        for j in range(1, K):
            tap = pltpu.roll(h, shift=j * dilation, axis=1)   # tap[:, t] = h[:, t - j*d]
            acc = acc + jnp.dot(conv_a_ref[0, layer, j, :, :], tap.astype(jnp.bfloat16),
                                preferred_element_type=jnp.float32)

        conv = acc + conv_b_ref[0, layer, :, :]
        # torch left-pads the conv OUTPUT: the first `pad` frames are exactly zero
        conv = jnp.where(t1 >= pad, conv, 0.0)
        # tanh + residual + conditioning
        h = jnp.tanh(conv) + h + cond

    # postprocess: Linear(C -> 1) (sublane reduction) + block residual
    post = jnp.sum(h * post_w_ref[0], axis=0, keepdims=True) + post_b_ref[0]   # (1, T)
    out_ref[0] = post + x


# ----------------------------------------------------------------------------
# Parameter packing + wrapper
# ----------------------------------------------------------------------------

def _pack_params(blocks, filter_length):
    """Stack per-block params into the layouts used by the kernel."""
    K = filter_length
    pre_w = jnp.stack([b['pre_w'] for b in blocks])[:, :, None]                  # (NB, C, 1)
    pre_b = jnp.stack([b['pre_b'] for b in blocks])[:, :, None]                  # (NB, C, 1)
    # per-layer conv weight w: (K, Cin, Cout).  Tap j is a shift of j*dilation into the past,
    # so A[j, cout, cin] = w[K-1-j, cin, cout].  Stored bf16 for MXU-native operands.
    conv_a = jnp.stack([
        jnp.stack([jnp.stack([w[K - 1 - j].T for j in range(K)])                 # (K, C, C)
                   for w in b['conv_w']])                                        # (L, K, C, C)
        for b in blocks]).astype(jnp.bfloat16)                                   # (NB, L, K, C, C)
    conv_b = jnp.stack([jnp.stack(b['conv_b']) for b in blocks])[..., None]      # (NB, L, C, 1)
    post_w = jnp.stack([b['post_w'] for b in blocks])[:, :, None]                # (NB, C, 1)
    post_b = jnp.stack([b['post_b'] for b in blocks])[:, :, None]                # (NB, 1, 1)
    return pre_w, pre_b, conv_a, conv_b, post_w, post_b


def filter_forward(blocks, src, condition, *, filter_length):
    """Filter.forward.  src: (B, T), condition: (B, T, C) -> (B, T).

    All sequences are full length T (packed == padded); see TODO at top of file.
    """
    B, T = src.shape
    C = condition.shape[-1]
    NB = len(blocks)
    L = len(blocks[0]['conv_w'])
    K = filter_length
    pad_max = (K - 1) * (2 ** (L - 1))
    assert pad_max < T, "receptive field of a block must be smaller than the sequence"

    pre_w, pre_b, conv_a, conv_b, post_w, post_b = _pack_params(blocks, K)

    src3 = src[:, None, :].astype(jnp.float32)                        # (B, 1, T)
    cond3 = jnp.transpose(condition, (0, 2, 1)).astype(jnp.float32)   # (B, C, T)  time on lanes

    kernel = functools.partial(_filter_block_kernel, num_layers=L, filter_length=K)

    # Rough per-core VMEM residency (double-buffered cond/src, resident out, per-block weights)
    # with headroom; explicit limit so the v5e 16 MiB scoped default is not the binding cap.
    vmem_est = 4 * T * (2 * C + 2 + 2 + 1) + 2 * conv_a.size + 4 * (
        pre_w.size + pre_b.size + conv_b.size + post_w.size + post_b.size)
    vmem_limit = int(min(max(8 * vmem_est, 32 * 1024 * 1024), 64 * 1024 * 1024))

    out = pl.pallas_call(
        kernel,
        out_shape=jax.ShapeDtypeStruct((B, 1, T), jnp.float32),
        grid=(B, NB),
        in_specs=[
            pl.BlockSpec((1, 1, T), lambda b, blk: (b, 0, 0)),             # src   (per batch)
            pl.BlockSpec((1, C, T), lambda b, blk: (b, 0, 0)),             # cond  (per batch)
            pl.BlockSpec((1, C, 1), lambda b, blk: (blk, 0, 0)),           # pre_w (per block)
            pl.BlockSpec((1, C, 1), lambda b, blk: (blk, 0, 0)),           # pre_b
            pl.BlockSpec((1, L, K, C, C), lambda b, blk: (blk, 0, 0, 0, 0)),  # conv_a
            pl.BlockSpec((1, L, C, 1), lambda b, blk: (blk, 0, 0, 0)),     # conv_b
            pl.BlockSpec((1, C, 1), lambda b, blk: (blk, 0, 0)),           # post_w
            pl.BlockSpec((1, 1, 1), lambda b, blk: (blk, 0, 0)),           # post_b
        ],
        out_specs=pl.BlockSpec((1, 1, T), lambda b, blk: (b, 0, 0)),       # revisited across blk
        compiler_params=pltpu.CompilerParams(
            dimension_semantics=("parallel", "arbitrary"),
            vmem_limit_bytes=vmem_limit),
    )(src3, cond3, pre_w, pre_b, conv_a, conv_b, post_w, post_b)

    return out[:, 0, :]


# ----------------------------------------------------------------------------
# Parameter init + pure-JAX reference (mirrors the PyTorch module)
# ----------------------------------------------------------------------------

def init_filter_params(key, *, channels, num_blocks, num_layers_per_block, filter_length):
    C, L, K = channels, num_layers_per_block, filter_length
    blocks = []
    for _ in range(num_blocks):
        key, k1, k2, k3, k4 = jax.random.split(key, 5)
        conv_w, conv_b = [], []
        for _ in range(L):
            key, kw, kb = jax.random.split(key, 3)
            conv_w.append(jax.random.normal(kw, (K, C, C), jnp.float32)
                          * (0.25 / math.sqrt(K * C)))
            conv_b.append(jax.random.normal(kb, (C,), jnp.float32) * 0.01)
        blocks.append(dict(
            pre_w=jax.random.normal(k1, (C,), jnp.float32) * 0.3,     # Linear(1 -> C)
            pre_b=jax.random.normal(k2, (C,), jnp.float32) * 0.01,
            conv_w=conv_w, conv_b=conv_b,
            post_w=jax.random.normal(k3, (C,), jnp.float32) * (0.3 / math.sqrt(C)),
            post_b=jax.random.normal(k4, (1,), jnp.float32) * 0.01,   # Linear(C -> 1)
        ))
    return blocks


def filter_reference(blocks, src, condition, *, filter_length):
    """Pure-JAX reference matching the PyTorch Filter (full-length sequences)."""
    K = filter_length
    x = src[:, :, None]                                               # (B, T, 1)
    for blk in blocks:
        src_orig = x
        h = x * blk['pre_w'][None, None, :] + blk['pre_b'][None, None, :]   # (B, T, C)
        for layer, (w, b) in enumerate(zip(blk['conv_w'], blk['conv_b'])):
            d = 2 ** layer
            pad = d * (K - 1)
            conv = lax.conv_general_dilated(
                h, w, window_strides=(1,), padding='VALID', rhs_dilation=(d,),
                dimension_numbers=('NWC', 'WIO', 'NWC'),
                precision=lax.Precision.HIGHEST) + b[None, None, :]
            conv = jnp.pad(conv, ((0, 0), (pad, 0), (0, 0)))          # left-pad the OUTPUT
            h = jnp.tanh(conv) + h + condition
        post = jnp.einsum('btc,c->bt', h, blk['post_w'],
                          precision=lax.Precision.HIGHEST)[:, :, None] + blk['post_b']
        x = post + src_orig
    return x[:, :, 0]


# ----------------------------------------------------------------------------
# Example run
# ----------------------------------------------------------------------------

if __name__ == "__main__":
    B, C, T = 2, 8, 256
    NUM_BLOCKS = 2                 # module default 5; reduced for the small demo
    NUM_LAYERS_PER_BLOCK = 4       # module default 10; dilations 1,2,4,8 -> max pad 16 < T
    FILTER_LENGTH = 3

    key = jax.random.PRNGKey(0)
    k_src, k_cond, k_par = jax.random.split(key, 3)
    src = jax.random.normal(k_src, (B, T), jnp.float32) * 0.3
    condition = jax.random.normal(k_cond, (B, T, C), jnp.float32) * 0.3
    blocks = init_filter_params(k_par, channels=C, num_blocks=NUM_BLOCKS,
                                num_layers_per_block=NUM_LAYERS_PER_BLOCK,
                                filter_length=FILTER_LENGTH)

    fwd = jax.jit(functools.partial(filter_forward, filter_length=FILTER_LENGTH))
    out = jax.block_until_ready(fwd(blocks, src, condition))

    ref = filter_reference(blocks, src, condition, filter_length=FILTER_LENGTH)

    assert out.shape == (B, T), out.shape
    assert bool(jnp.all(jnp.isfinite(out)))
    max_err = float(jnp.max(jnp.abs(out - ref)))
    assert max_err < 5e-2, f"kernel/reference mismatch, max_err={max_err}"
    print("KERNEL_OK")
</pallas_src>

<mosaic_0001>
module attributes {stable_mosaic.version = 11 : i64} {
  func.func @_filter_block_kernel(%arg0: i32, %arg1: i32, %arg2: memref<1x1x256xf32, #tpu.memory_space<vmem>>, %arg3: memref<1x8x256xf32, #tpu.memory_space<vmem>>, %arg4: memref<1x8x1xf32, #tpu.memory_space<vmem>>, %arg5: memref<1x8x1xf32, #tpu.memory_space<vmem>>, %arg6: memref<1x4x3x8x8xbf16, #tpu.memory_space<vmem>>, %arg7: memref<1x4x8x1xf32, #tpu.memory_space<vmem>>, %arg8: memref<1x8x1xf32, #tpu.memory_space<vmem>>, %arg9: memref<1x1x1xf32, #tpu.memory_space<vmem>>, %arg10: memref<1x1x256xf32, #tpu.memory_space<vmem>>) attributes {dimension_semantics = [#tpu.dimension_semantics<parallel>, #tpu.dimension_semantics<arbitrary>], iteration_bounds = array<i64: 2, 2>, scalar_prefetch = 0 : i64, scratch_operands = 0 : i64, tpu.core_type = #tpu.core_type<tc>, window_params = [{transform_indices = @transform_0, window_bounds = array<i64: 1, 1, 256>}, {transform_indices = @transform_1, window_bounds = array<i64: 1, 8, 256>}, {transform_indices = @transform_2, window_bounds = array<i64: 1, 8, 1>}, {transform_indices = @transform_3, window_bounds = array<i64: 1, 8, 1>}, {transform_indices = @transform_4, window_bounds = array<i64: 1, 4, 3, 8, 8>}, {transform_indices = @transform_5, window_bounds = array<i64: 1, 4, 8, 1>}, {transform_indices = @transform_6, window_bounds = array<i64: 1, 8, 1>}, {transform_indices = @transform_7, window_bounds = array<i64: 1, 1, 1>}, {transform_indices = @transform_8, window_bounds = array<i64: 1, 1, 256>}]} {
    %c0_i32 = arith.constant 0 : i32
    %0 = arith.cmpi eq, %arg1, %c0_i32 : i32
    %1 = arith.extui %0 : i1 to i32
    %c0_i32_0 = arith.constant 0 : i32
    %2 = arith.cmpi ne, %1, %c0_i32_0 : i32
    scf.if %2 {
      %c0_117 = arith.constant 0 : index
      %c0_118 = arith.constant 0 : index
      %c0_119 = arith.constant 0 : index
      %147 = vector.load %arg2[%c0_117, %c0_118, %c0_119] : memref<1x1x256xf32, #tpu.memory_space<vmem>>, vector<1x1x256xf32>
      %148 = vector.shape_cast %147 : vector<1x1x256xf32> to vector<1x256xf32>
      %c0_120 = arith.constant 0 : index
      %c0_121 = arith.constant 0 : index
      %c0_122 = arith.constant 0 : index
      %149 = vector.load %arg10[%c0_120, %c0_121, %c0_122] : memref<1x1x256xf32, #tpu.memory_space<vmem>>, vector<1x1x256xf32>
      %150 = vector.shape_cast %149 : vector<1x1x256xf32> to vector<1x256xf32>
      %151 = vector.shape_cast %148 : vector<1x256xf32> to vector<1x1x256xf32>
      tpu.vector_store %arg10[%c0_120, %c0_121, %c0_122], %151 {strides = array<i32>} : memref<1x1x256xf32, #tpu.memory_space<vmem>>, vector<1x1x256xf32>,
    } else {
    }
    %c0 = arith.constant 0 : index
    %c0_1 = arith.constant 0 : index
    %c0_2 = arith.constant 0 : index
    %3 = vector.load %arg3[%c0, %c0_1, %c0_2] : memref<1x8x256xf32, #tpu.memory_space<vmem>>, vector<1x8x256xf32>
    %4 = vector.shape_cast %3 : vector<1x8x256xf32> to vector<8x256xf32>
    %c0_3 = arith.constant 0 : index
    %c0_4 = arith.constant 0 : index
    %c0_5 = arith.constant 0 : index
    %5 = vector.load %arg10[%c0_3, %c0_4, %c0_5] : memref<1x1x256xf32, #tpu.memory_space<vmem>>, vector<1x1x256xf32>
    %6 = vector.shape_cast %5 : vector<1x1x256xf32> to vector<1x256xf32>
    %7 = tpu.iota {dimensions = array<i32: 1>} : vector<1x256xi32>
    %c0_6 = arith.constant 0 : index
    %c0_7 = arith.constant 0 : index
    %c0_8 = arith.constant 0 : index
    %8 = vector.load %arg4[%c0_6, %c0_7, %c0_8] : memref<1x8x1xf32, #tpu.memory_space<vmem>>, vector<1x8x1xf32>
    %9 = vector.shape_cast %8 : vector<1x8x1xf32> to vector<8x1xf32>
    %10 = vector.broadcast %9 : vector<8x1xf32> to vector<8x256xf32>
    %11 = vector.broadcast %6 : vector<1x256xf32> to vector<8x256xf32>
    %12 = arith.mulf %10, %11 : vector<8x256xf32>
    %c0_9 = arith.constant 0 : index
    %c0_10 = arith.constant 0 : index
    %c0_11 = arith.constant 0 : index
    %13 = vector.load %arg5[%c0_9, %c0_10, %c0_11] : memref<1x8x1xf32, #tpu.memory_space<vmem>>, vector<1x8x1xf32>
    %14 = vector.shape_cast %13 : vector<1x8x1xf32> to vector<8x1xf32>
    %15 = vector.broadcast %14 : vector<8x1xf32> to vector<8x256xf32>
    %16 = arith.addf %12, %15 : vector<8x256xf32>
    %c0_12 = arith.constant 0 : index
    %c0_13 = arith.constant 0 : index
    %c0_14 = arith.constant 0 : index
    %c0_15 = arith.constant 0 : index
    %c0_16 = arith.constant 0 : index
    %17 = vector.load %arg6[%c0_12, %c0_13, %c0_14, %c0_15, %c0_16] : memref<1x4x3x8x8xbf16, #tpu.memory_space<vmem>>, vector<1x1x1x8x8xbf16>
    %18 = vector.shape_cast %17 : vector<1x1x1x8x8xbf16> to vector<8x8xbf16>
    %19 = arith.truncf %16 : vector<8x256xf32> to vector<8x256xbf16>
    %cst = arith.constant dense<0.000000e+00> : vector<8x256xf32>
    %20 = tpu.matmul %18, %19, %cst {dimension_numbers = #tpu.dot_dimension_numbers<[1], [0], [0], [1], [0, 0, 1, 1], [], []>} : vector<8x8xbf16>, vector<8x256xbf16>, vector<8x256xf32> -> vector<8x256xf32>
    %c1_i32 = arith.constant 1 : i32
    %21 = tpu.dynamic_rotate %16 by %c1_i32 dim 1 : vector<8x256xf32>, i32 -> vector<8x256xf32>
    %c0_17 = arith.constant 0 : index
    %c0_18 = arith.constant 0 : index
    %c1 = arith.constant 1 : index
    %c0_19 = arith.constant 0 : index
    %c0_20 = arith.constant 0 : index
    %22 = vector.load %arg6[%c0_17, %c0_18, %c1, %c0_19, %c0_20] : memref<1x4x3x8x8xbf16, #tpu.memory_space<vmem>>, vector<1x1x1x8x8xbf16>
    %23 = vector.shape_cast %22 : vector<1x1x1x8x8xbf16> to vector<8x8xbf16>
    %24 = arith.truncf %21 : vector<8x256xf32> to vector<8x256xbf16>
    %cst_21 = arith.constant dense<0.000000e+00> : vector<8x256xf32>
    %25 = tpu.matmul %23, %24, %cst_21 {dimension_numbers = #tpu.dot_dimension_numbers<[1], [0], [0], [1], [0, 0, 1, 1], [], []>} : vector<8x8xbf16>, vector<8x256xbf16>, vector<8x256xf32> -> vector<8x256xf32>
    %26 = arith.addf %20, %25 : vector<8x256xf32>
    %c2_i32 = arith.constant 2 : i32
    %27 = tpu.dynamic_rotate %16 by %c2_i32 dim 1 : vector<8x256xf32>, i32 -> vector<8x256xf32>
    %c0_22 = arith.constant 0 : index
    %c0_23 = arith.constant 0 : index
    %c2 = arith.constant 2 : index
    %c0_24 = arith.constant 0 : index
    %c0_25 = arith.constant 0 : index
    %28 = vector.load %arg6[%c0_22, %c0_23, %c2, %c0_24, %c0_25] : memref<1x4x3x8x8xbf16, #tpu.memory_space<vmem>>, vector<1x1x1x8x8xbf16>
    %29 = vector.shape_cast %28 : vector<1x1x1x8x8xbf16> to vector<8x8xbf16>
    %30 = arith.truncf %27 : vector<8x256xf32> to vector<8x256xbf16>
    %cst_26 = arith.constant dense<0.000000e+00> : vector<8x256xf32>
    %31 = tpu.matmul %29, %30, %cst_26 {dimension_numbers = #tpu.dot_dimension_numbers<[1], [0], [0], [1], [0, 0, 1, 1], [], []>} : vector<8x8xbf16>, vector<8x256xbf16>, vector<8x256xf32> -> vector<8x256xf32>
    %32 = arith.addf %26, %31 : vector<8x256xf32>
    %c0_27 = arith.constant 0 : index
    %c0_28 = arith.constant 0 : index
    %c0_29 = arith.constant 0 : index
    %c0_30 = arith.constant 0 : index
    %33 = vector.load %arg7[%c0_27, %c0_28, %c0_29, %c0_30] : memref<1x4x8x1xf32, #tpu.memory_space<vmem>>, vector<1x1x8x1xf32>
    %34 = vector.shape_cast %33 : vector<1x1x8x1xf32> to vector<8x1xf32>
    %35 = vector.broadcast %34 : vector<8x1xf32> to vector<8x256xf32>
    %36 = arith.addf %32, %35 : vector<8x256xf32>
    %c2_i32_31 = arith.constant 2 : i32
    %37 = vector.broadcast %c2_i32_31 : i32 to vector<1x256xi32>
    %38 = arith.cmpi sge, %7, %37 : vector<1x256xi32>
    %cst_32 = arith.constant 0.000000e+00 : f32
    %39 = vector.shape_cast %38 : vector<1x256xi1> to vector<1x256xi1>
    %40 = vector.broadcast %39 : vector<1x256xi1> to vector<8x256xi1>
    %41 = vector.broadcast %cst_32 : f32 to vector<8x256xf32>
    %42 = arith.select %40, %36, %41 : vector<8x256xi1>, vector<8x256xf32>
    %43 = math.tanh %42 : vector<8x256xf32>
    %44 = arith.addf %43, %16 : vector<8x256xf32>
    %45 = arith.addf %44, %4 : vector<8x256xf32>
    %c0_33 = arith.constant 0 : index
    %c1_34 = arith.constant 1 : index
    %c0_35 = arith.constant 0 : index
    %c0_36 = arith.constant 0 : index
    %c0_37 = arith.constant 0 : index
    %46 = vector.load %arg6[%c0_33, %c1_34, %c0_35, %c0_36, %c0_37] : memref<1x4x3x8x8xbf16, #tpu.memory_space<vmem>>, vector<1x1x1x8x8xbf16>
    %47 = vector.shape_cast %46 : vector<1x1x1x8x8xbf16> to vector<8x8xbf16>
    %48 = arith.truncf %45 : vector<8x256xf32> to vector<8x256xbf16>
    %cst_38 = arith.constant dense<0.000000e+00> : vector<8x256xf32>
    %49 = tpu.matmul %47, %48, %cst_38 {dimension_numbers = #tpu.dot_dimension_numbers<[1], [0], [0], [1], [0, 0, 1, 1], [], []>} : vector<8x8xbf16>, vector<8x256xbf16>, vector<8x256xf32> -> vector<8x256xf32>
    %c2_i32_39 = arith.constant 2 : i32
    %50 = tpu.dynamic_rotate %45 by %c2_i32_39 dim 1 : vector<8x256xf32>, i32 -> vector<8x256xf32>
    %c0_40 = arith.constant 0 : index
    %c1_41 = arith.constant 1 : index
    %c1_42 = arith.constant 1 : index
    %c0_43 = arith.constant 0 : index
    %c0_44 = arith.constant 0 : index
    %51 = vector.load %arg6[%c0_40, %c1_41, %c1_42, %c0_43, %c0_44] : memref<1x4x3x8x8xbf16, #tpu.memory_space<vmem>>, vector<1x1x1x8x8xbf16>
    %52 = vector.shape_cast %51 : vector<1x1x1x8x8xbf16> to vector<8x8xbf16>
    %53 = arith.truncf %50 : vector<8x256xf32> to vector<8x256xbf16>
    %cst_45 = arith.constant dense<0.000000e+00> : vector<8x256xf32>
    %54 = tpu.matmul %52, %53, %cst_45 {dimension_numbers = #tpu.dot_dimension_numbers<[1], [0], [0], [1], [0, 0, 1, 1], [], []>} : vector<8x8xbf16>, vector<8x256xbf16>, vector<8x256xf32> -> vector<8x256xf32>
    %55 = arith.addf %49, %54 : vector<8x256xf32>
    %c4_i32 = arith.constant 4 : i32
    %56 = tpu.dynamic_rotate %45 by %c4_i32 dim 1 : vector<8x256xf32>, i32 -> vector<8x256xf32>
    %c0_46 = arith.constant 0 : index
    %c1_47 = arith.constant 1 : index
    %c2_48 = arith.constant 2 : index
    %c0_49 = arith.constant 0 : index
    %c0_50 = arith.constant 0 : index
    %57 = vector.load %arg6[%c0_46, %c1_47, %c2_48, %c0_49, %c0_50] : memref<1x4x3x8x8xbf16, #tpu.memory_space<vmem>>, vector<1x1x1x8x8xbf16>
    %58 = vector.shape_cast %57 : vector<1x1x1x8x8xbf16> to vector<8x8xbf16>
    %59 = arith.truncf %56 : vector<8x256xf32> to vector<8x256xbf16>
    %cst_51 = arith.constant dense<0.000000e+00> : vector<8x256xf32>
    %60 = tpu.matmul %58, %59, %cst_51 {dimension_numbers = #tpu.dot_dimension_numbers<[1], [0], [0], [1], [0, 0, 1, 1], [], []>} : vector<8x8xbf16>, vector<8x256xbf16>, vector<8x256xf32> -> vector<8x256xf32>
    %61 = arith.addf %55, %60 : vector<8x256xf32>
    %c0_52 = arith.constant 0 : index
    %c1_53 = arith.constant 1 : index
    %c0_54 = arith.constant 0 : index
    %c0_55 = arith.constant 0 : index
    %62 = vector.load %arg7[%c0_52, %c1_53, %c0_54, %c0_55] : memref<1x4x8x1xf32, #tpu.memory_space<vmem>>, vector<1x1x8x1xf32>
    %63 = vector.shape_cast %62 : vector<1x1x8x1xf32> to vector<8x1xf32>
    %64 = vector.broadcast %63 : vector<8x1xf32> to vector<8x256xf32>
    %65 = arith.addf %61, %64 : vector<8x256xf32>
    %c4_i32_56 = arith.constant 4 : i32
    %66 = vector.broadcast %c4_i32_56 : i32 to vector<1x256xi32>
    %67 = arith.cmpi sge, %7, %66 : vector<1x256xi32>
    %cst_57 = arith.constant 0.000000e+00 : f32
    %68 = vector.shape_cast %67 : vector<1x256xi1> to vector<1x256xi1>
    %69 = vector.broadcast %68 : vector<1x256xi1> to vector<8x256xi1>
    %70 = vector.broadcast %cst_57 : f32 to vector<8x256xf32>
    %71 = arith.select %69, %65, %70 : vector<8x256xi1>, vector<8x256xf32>
    %72 = math.tanh %71 : vector<8x256xf32>
    %73 = arith.addf %72, %45 : vector<8x256xf32>
    %74 = arith.addf %73, %4 : vector<8x256xf32>
    %c0_58 = arith.constant 0 : index
    %c2_59 = arith.constant 2 : index
    %c0_60 = arith.constant 0 : index
    %c0_61 = arith.constant 0 : index
    %c0_62 = arith.constant 0 : index
    %75 = vector.load %arg6[%c0_58, %c2_59, %c0_60, %c0_61, %c0_62] : memref<1x4x3x8x8xbf16, #tpu.memory_space<vmem>>, vector<1x1x1x8x8xbf16>
    %76 = vector.shape_cast %75 : vector<1x1x1x8x8xbf16> to vector<8x8xbf16>
    %77 = arith.truncf %74 : vector<8x256xf32> to vector<8x256xbf16>
    %cst_63 = arith.constant dense<0.000000e+00> : vector<8x256xf32>
    %78 = tpu.matmul %76, %77, %cst_63 {dimension_numbers = #tpu.dot_dimension_numbers<[1], [0], [0], [1], [0, 0, 1, 1], [], []>} : vector<8x8xbf16>, vector<8x256xbf16>, vector<8x256xf32> -> vector<8x256xf32>
    %c4_i32_64 = arith.constant 4 : i32
    %79 = tpu.dynamic_rotate %74 by %c4_i32_64 dim 1 : vector<8x256xf32>, i32 -> vector<8x256xf32>
    %c0_65 = arith.constant 0 : index
    %c2_66 = arith.constant 2 : index
    %c1_67 = arith.constant 1 : index
    %c0_68 = arith.constant 0 : index
    %c0_69 = arith.constant 0 : index
    %80 = vector.load %arg6[%c0_65, %c2_66, %c1_67, %c0_68, %c0_69] : memref<1x4x3x8x8xbf16, #tpu.memory_space<vmem>>, vector<1x1x1x8x8xbf16>
    %81 = vector.shape_cast %80 : vector<1x1x1x8x8xbf16> to vector<8x8xbf16>
    %82 = arith.truncf %79 : vector<8x256xf32> to vector<8x256xbf16>
    %cst_70 = arith.constant dense<0.000000e+00> : vector<8x256xf32>
    %83 = tpu.matmul %81, %82, %cst_70 {dimension_numbers = #tpu.dot_dimension_numbers<[1], [0], [0], [1], [0, 0, 1, 1], [], []>} : vector<8x8xbf16>, vector<8x256xbf16>, vector<8x256xf32> -> vector<8x256xf32>
    %84 = arith.addf %78, %83 : vector<8x256xf32>
    %c8_i32 = arith.constant 8 : i32
    %85 = tpu.dynamic_rotate %74 by %c8_i32 dim 1 : vector<8x256xf32>, i32 -> vector<8x256xf32>
    %c0_71 = arith.constant 0 : index
    %c2_72 = arith.constant 2 : index
    %c2_73 = arith.constant 2 : index
    %c0_74 = arith.constant 0 : index
    %c0_75 = arith.constant 0 : index
    %86 = vector.load %arg6[%c0_71, %c2_72, %c2_73, %c0_74, %c0_75] : memref<1x4x3x8x8xbf16, #tpu.memory_space<vmem>>, vector<1x1x1x8x8xbf16>
    %87 = vector.shape_cast %86 : vector<1x1x1x8x8xbf16> to vector<8x8xbf16>
    %88 = arith.truncf %85 : vector<8x256xf32> to vector<8x256xbf16>
    %cst_76 = arith.constant dense<0.000000e+00> : vector<8x256xf32>
    %89 = tpu.matmul %87, %88, %cst_76 {dimension_numbers = #tpu.dot_dimension_numbers<[1], [0], [0], [1], [0, 0, 1, 1], [], []>} : vector<8x8xbf16>, vector<8x256xbf16>, vector<8x256xf32> -> vector<8x256xf32>
    %90 = arith.addf %84, %89 : vector<8x256xf32>
    %c0_77 = arith.constant 0 : index
    %c2_78 = arith.constant 2 : index
    %c0_79 = arith.constant 0 : index
    %c0_80 = arith.constant 0 : index
    %91 = vector.load %arg7[%c0_77, %c2_78, %c0_79, %c0_80] : memref<1x4x8x1xf32, #tpu.memory_space<vmem>>, vector<1x1x8x1xf32>
    %92 = vector.shape_cast %91 : vector<1x1x8x1xf32> to vector<8x1xf32>
    %93 = vector.broadcast %92 : vector<8x1xf32> to vector<8x256xf32>
    %94 = arith.addf %90, %93 : vector<8x256xf32>
    %c8_i32_81 = arith.constant 8 : i32
    %95 = vector.broadcast %c8_i32_81 : i32 to vector<1x256xi32>
    %96 = arith.cmpi sge, %7, %95 : vector<1x256xi32>
    %cst_82 = arith.constant 0.000000e+00 : f32
    %97 = vector.shape_cast %96 : vector<1x256xi1> to vector<1x256xi1>
    %98 = vector.broadcast %97 : vector<1x256xi1> to vector<8x256xi1>
    %99 = vector.broadcast %cst_82 : f32 to vector<8x256xf32>
    %100 = arith.select %98, %94, %99 : vector<8x256xi1>, vector<8x256xf32>
    %101 = math.tanh %100 : vector<8x256xf32>
    %102 = arith.addf %101, %74 : vector<8x256xf32>
    %103 = arith.addf %102, %4 : vector<8x256xf32>
    %c0_83 = arith.constant 0 : index
    %c3 = arith.constant 3 : index
    %c0_84 = arith.constant 0 : index
    %c0_85 = arith.constant 0 : index
    %c0_86 = arith.constant 0 : index
    %104 = vector.load %arg6[%c0_83, %c3, %c0_84, %c0_85, %c0_86] : memref<1x4x3x8x8xbf16, #tpu.memory_space<vmem>>, vector<1x1x1x8x8xbf16>
    %105 = vector.shape_cast %104 : vector<1x1x1x8x8xbf16> to vector<8x8xbf16>
    %106 = arith.truncf %103 : vector<8x256xf32> to vector<8x256xbf16>
    %cst_87 = arith.constant dense<0.000000e+00> : vector<8x256xf32>
    %107 = tpu.matmul %105, %106, %cst_87 {dimension_numbers = #tpu.dot_dimension_numbers<[1], [0], [0], [1], [0, 0, 1, 1], [], []>} : vector<8x8xbf16>, vector<8x256xbf16>, vector<8x256xf32> -> vector<8x256xf32>
    %c8_i32_88 = arith.constant 8 : i32
    %108 = tpu.dynamic_rotate %103 by %c8_i32_88 dim 1 : vector<8x256xf32>, i32 -> vector<8x256xf32>
    %c0_89 = arith.constant 0 : index
    %c3_90 = arith.constant 3 : index
    %c1_91 = arith.constant 1 : index
    %c0_92 = arith.constant 0 : index
    %c0_93 = arith.constant 0 : index
    %109 = vector.load %arg6[%c0_89, %c3_90, %c1_91, %c0_92, %c0_93] : memref<1x4x3x8x8xbf16, #tpu.memory_space<vmem>>, vector<1x1x1x8x8xbf16>
    %110 = vector.shape_cast %109 : vector<1x1x1x8x8xbf16> to vector<8x8xbf16>
    %111 = arith.truncf %108 : vector<8x256xf32> to vector<8x256xbf16>
    %cst_94 = arith.constant dense<0.000000e+00> : vector<8x256xf32>
    %112 = tpu.matmul %110, %111, %cst_94 {dimension_numbers = #tpu.dot_dimension_numbers<[1], [0], [0], [1], [0, 0, 1, 1], [], []>} : vector<8x8xbf16>, vector<8x256xbf16>, vector<8x256xf32> -> vector<8x256xf32>
    %113 = arith.addf %107, %112 : vector<8x256xf32>
    %c16_i32 = arith.constant 16 : i32
    %114 = tpu.dynamic_rotate %103 by %c16_i32 dim 1 : vector<8x256xf32>, i32 -> vector<8x256xf32>
    %c0_95 = arith.constant 0 : index
    %c3_96 = arith.constant 3 : index
    %c2_97 = arith.constant 2 : index
    %c0_98 = arith.constant 0 : index
    %c0_99 = arith.constant 0 : index
    %115 = vector.load %arg6[%c0_95, %c3_96, %c2_97, %c0_98, %c0_99] : memref<1x4x3x8x8xbf16, #tpu.memory_space<vmem>>, vector<1x1x1x8x8xbf16>
    %116 = vector.shape_cast %115 : vector<1x1x1x8x8xbf16> to vector<8x8xbf16>
    %117 = arith.truncf %114 : vector<8x256xf32> to vector<8x256xbf16>
    %cst_100 = arith.constant dense<0.000000e+00> : vector<8x256xf32>
    %118 = tpu.matmul %116, %117, %cst_100 {dimension_numbers = #tpu.dot_dimension_numbers<[1], [0], [0], [1], [0, 0, 1, 1], [], []>} : vector<8x8xbf16>, vector<8x256xbf16>, vector<8x256xf32> -> vector<8x256xf32>
    %119 = arith.addf %113, %118 : vector<8x256xf32>
    %c0_101 = arith.constant 0 : index
    %c3_102 = arith.constant 3 : index
    %c0_103 = arith.constant 0 : index
    %c0_104 = arith.constant 0 : index
    %120 = vector.load %arg7[%c0_101, %c3_102, %c0_103, %c0_104] : memref<1x4x8x1xf32, #tpu.memory_space<vmem>>, vector<1x1x8x1xf32>
    %121 = vector.shape_cast %120 : vector<1x1x8x1xf32> to vector<8x1xf32>
    %122 = vector.broadcast %121 : vector<8x1xf32> to vector<8x256xf32>
    %123 = arith.addf %119, %122 : vector<8x256xf32>
    %c16_i32_105 = arith.constant 16 : i32
    %124 = vector.broadcast %c16_i32_105 : i32 to vector<1x256xi32>
    %125 = arith.cmpi sge, %7, %124 : vector<1x256xi32>
    %cst_106 = arith.constant 0.000000e+00 : f32
    %126 = vector.shape_cast %125 : vector<1x256xi1> to vector<1x256xi1>
    %127 = vector.broadcast %126 : vector<1x256xi1> to vector<8x256xi1>
    %128 = vector.broadcast %cst_106 : f32 to vector<8x256xf32>
    %129 = arith.select %127, %123, %128 : vector<8x256xi1>, vector<8x256xf32>
    %130 = math.tanh %129 : vector<8x256xf32>
    %131 = arith.addf %130, %103 : vector<8x256xf32>
    %132 = arith.addf %131, %4 : vector<8x256xf32>
    %c0_107 = arith.constant 0 : index
    %c0_108 = arith.constant 0 : index
    %c0_109 = arith.constant 0 : index
    %133 = vector.load %arg8[%c0_107, %c0_108, %c0_109] : memref<1x8x1xf32, #tpu.memory_space<vmem>>, vector<1x8x1xf32>
    %134 = vector.shape_cast %133 : vector<1x8x1xf32> to vector<8x1xf32>
    %135 = vector.broadcast %134 : vector<8x1xf32> to vector<8x256xf32>
    %136 = arith.mulf %132, %135 : vector<8x256xf32>
    %cst_110 = arith.constant dense<0.000000e+00> : vector<256xf32>
    %137 = vector.multi_reduction <add>, %136, %cst_110 [0] : vector<8x256xf32> to vector<256xf32>
    %138 = vector.shape_cast %137 : vector<256xf32> to vector<1x256xf32>
    %c0_111 = arith.constant 0 : index
    %c0_112 = arith.constant 0 : index
    %c0_113 = arith.constant 0 : index
    %139 = vector.load %arg9[%c0_111, %c0_112, %c0_113] : memref<1x1x1xf32, #tpu.memory_space<vmem>>, vector<1x1x1xf32>
    %140 = vector.shape_cast %139 : vector<1x1x1xf32> to vector<1x1xf32>
    %141 = vector.broadcast %140 : vector<1x1xf32> to vector<1x256xf32>
    %142 = arith.addf %138, %141 : vector<1x256xf32>
    %143 = arith.addf %142, %6 : vector<1x256xf32>
    %c0_114 = arith.constant 0 : index
    %c0_115 = arith.constant 0 : index
    %c0_116 = arith.constant 0 : index
    %144 = vector.load %arg10[%c0_114, %c0_115, %c0_116] : memref<1x1x256xf32, #tpu.memory_space<vmem>>, vector<1x1x256xf32>
    %145 = vector.shape_cast %144 : vector<1x1x256xf32> to vector<1x256xf32>
    %146 = vector.shape_cast %143 : vector<1x256xf32> to vector<1x1x256xf32>
    tpu.vector_store %arg10[%c0_114, %c0_115, %c0_116], %146 {strides = array<i32>} : memref<1x1x256xf32, #tpu.memory_space<vmem>>, vector<1x1x256xf32>,
    return
  }
  func.func @transform_0(%arg0: i32, %arg1: i32) -> (i32, i32, i32) {
    %c0_i32 = arith.constant 0 : i32
    %c0_i32_0 = arith.constant 0 : i32
    %c0_i32_1 = arith.constant 0 : i32
    return %arg0, %c0_i32, %c0_i32_0 : i32, i32, i32
  }
  func.func @transform_1(%arg0: i32, %arg1: i32) -> (i32, i32, i32) {
    %c0_i32 = arith.constant 0 : i32
    %c0_i32_0 = arith.constant 0 : i32
    %c0_i32_1 = arith.constant 0 : i32
    return %arg0, %c0_i32, %c0_i32_0 : i32, i32, i32
  }
  func.func @transform_2(%arg0: i32, %arg1: i32) -> (i32, i32, i32) {
    %c0_i32 = arith.constant 0 : i32
    %c0_i32_0 = arith.constant 0 : i32
    %c0_i32_1 = arith.constant 0 : i32
    return %arg1, %c0_i32, %c0_i32_0 : i32, i32, i32
  }
  func.func @transform_3(%arg0: i32, %arg1: i32) -> (i32, i32, i32) {
    %c0_i32 = arith.constant 0 : i32
    %c0_i32_0 = arith.constant 0 : i32
    %c0_i32_1 = arith.constant 0 : i32
    return %arg1, %c0_i32, %c0_i32_0 : i32, i32, i32
  }
  func.func @transform_4(%arg0: i32, %arg1: i32) -> (i32, i32, i32, i32, i32) {
    %c0_i32 = arith.constant 0 : i32
    %c0_i32_0 = arith.constant 0 : i32
    %c0_i32_1 = arith.constant 0 : i32
    %c0_i32_2 = arith.constant 0 : i32
    %c0_i32_3 = arith.constant 0 : i32
    return %arg1, %c0_i32, %c0_i32_0, %c0_i32_1, %c0_i32_2 : i32, i32, i32, i32, i32
  }
  func.func @transform_5(%arg0: i32, %arg1: i32) -> (i32, i32, i32, i32) {
    %c0_i32 = arith.constant 0 : i32
    %c0_i32_0 = arith.constant 0 : i32
    %c0_i32_1 = arith.constant 0 : i32
    %c0_i32_2 = arith.constant 0 : i32
    return %arg1, %c0_i32, %c0_i32_0, %c0_i32_1 : i32, i32, i32, i32
  }
  func.func @transform_6(%arg0: i32, %arg1: i32) -> (i32, i32, i32) {
    %c0_i32 = arith.constant 0 : i32
    %c0_i32_0 = arith.constant 0 : i32
    %c0_i32_1 = arith.constant 0 : i32
    return %arg1, %c0_i32, %c0_i32_0 : i32, i32, i32
  }
  func.func @transform_7(%arg0: i32, %arg1: i32) -> (i32, i32, i32) {
    %c0_i32 = arith.constant 0 : i32
    %c0_i32_0 = arith.constant 0 : i32
    %c0_i32_1 = arith.constant 0 : i32
    return %arg1, %c0_i32, %c0_i32_0 : i32, i32, i32
  }
  func.func @transform_8(%arg0: i32, %arg1: i32) -> (i32, i32, i32) {
    %c0_i32 = arith.constant 0 : i32
    %c0_i32_0 = arith.constant 0 : i32
    %c0_i32_1 = arith.constant 0 : i32
    return %arg0, %c0_i32, %c0_i32_0 : i32, i32, i32
  }
}

</mosaic_0001>

<llo_original>
// kernel: filter_forward.1
$region0: #{filter_forward.1}
  #allocation0 [shape = 'u32[]', space=smem, size = 0x4, offset = 0x4, fixed_abs, tag = 'smem constant byte address 0x4 - core index']
  #allocation1 [shape = 'u32[144,128]{1,0:T(1,128)}', space=vmem, size = 0x12000, scoped, tag = 'internal scratch']
  %s0 = inlined_call_operand.vmem [shape: f32[2,1,256], index: 0, kind: input, shape index: {}]
  %s1 = inlined_call_operand.vmem [shape: f32[2,8,256], index: 1, kind: input, shape index: {}]
  %s2 = inlined_call_operand.vmem [shape: f32[2,8,1], index: 2, kind: input, shape index: {}]
  %s3 = inlined_call_operand.vmem [shape: f32[2,8,1], index: 3, kind: input, shape index: {}]
  %s4 = inlined_call_operand.vmem [shape: bf16[2,4,3,8,8], index: 4, kind: input, shape index: {}]
  %s5 = inlined_call_operand.vmem [shape: f32[2,4,8,1], index: 5, kind: input, shape index: {}]
  %s6 = inlined_call_operand.vmem [shape: f32[2,8,1], index: 6, kind: input, shape index: {}]
  %s7 = inlined_call_operand.vmem [shape: f32[2,1,1], index: 7, kind: input, shape index: {}]
  %s8 = inlined_call_operand.vmem [shape: f32[2,1,256], index: 8, kind: output, shape index: {}]
  %s9 = sld [smem:[#allocation0]]
  $region69: #{filter_forward.1} parent=0
    _
  %s11 = ssub.s32 1, %s9
  %s12 = scalar_select 0, %s11, %s9
  loop: start=0, step=1, limit=6
  $region2: #{filter_forward.1} parent=0 // loop_pre_header
    _
  $region3: #{filter_forward.1} parent=0 // loop_header
    %s14 = sphi 0, %s18
    %p15 = scmp.ge.s32.totalorder %s14, 6
    %s21 = sphi 0, %s33
    %s22 = sphi 0, %s29
    %s23 = sphi 0, %s21
    %s24 = sphi 0, %s22
    %s25 = sphi 0, %s23
    %s26 = sphi 0, %s24
    %s36 = sphi 0, %s38
    %s39 = sphi 0, %s36
    %s40 = sphi 0, %s39
    %s56 = sphi 0, %s40
    %s62 = sphi 0, %s64
    %s65 = sphi 0, %s62
    %s66 = sphi 0, %s65
    %s82 = sphi 0, %s66
    %s88 = sphi 0, %s90
    %s91 = sphi 0, %s88
    %s92 = sphi 0, %s91
    %s108 = sphi 0, %s92
    %s114 = sphi 0, %s116
    %s117 = sphi 0, %s114
    %s118 = sphi 0, %s117
    %s134 = sphi 0, %s118
    %s140 = sphi 0, %s142
    %s143 = sphi 0, %s140
    %s144 = sphi 0, %s143
    %s160 = sphi 0, %s144
    %s166 = sphi 0, %s168
    %s169 = sphi 0, %s166
    %s170 = sphi 0, %s169
    %s186 = sphi 0, %s170
    %s192 = sphi 0, %s194
    %s195 = sphi 0, %s192
    %s196 = sphi 0, %s195
    %s212 = sphi 0, %s196
    %s218 = sphi 0, %s220
    %s221 = sphi 0, %s218
    %s222 = sphi 0, %s221
    %s238 = sphi 0, %s222
    %s244 = sphi 0, %s246
    %s247 = sphi 0, %s244
    %s248 = sphi 0, %s247
    %s264 = sphi 0, %s248
  $region4: #{filter_forward.1} parent=0 // loop_header_branch
    %17 = sbr.rel (%p15) target = $region8
  $region5: #{filter_forward.1} parent=0 // loop_body
    %s19 = ssub.s32 %s14, 1
    %s20 = ssub.s32 %s14, 2
    %s27 = sadd.s32 1, %s22
    %p28 = scmp.ge.s32.totalorder %s27, 2
    %s29 = scalar_select %p28, 0, %s27
    %s30 = sadd.s32 1, %s21
    %s31 = scalar_select %p28, %s30, %s21
    %p32 = scmp.ge.s32.totalorder %s31, 2
    %s33 = scalar_select %p32, 0, %s31
    %s34 = ssub.s32 %s21, %s33
    %p35 = scmp.eq.s32.totalorder %s34, 0
    %s37 = sadd.s32 %s36, 1
    %s38 = scalar_select %p35, %s36, %s37
    %p41 = pneg %p35
    %p42 = scmp.eq.s32.totalorder %s14, 3
    %p43 = por %p41, %p42
    %p44 = scmp.ne.s32.totalorder %s36, %s39
    %p45 = scmp.eq.s32.totalorder %s14, 0
    %p46 = por %p44, %p45
    %p47 = scmp.ne.s32.totalorder %s36, %s39
    %p48 = scmp.eq.s32.totalorder %s19, 3
    %p49 = por %p47, %p48
    %p50 = scmp.ne.s32.totalorder %s39, %s40
    %p51 = scmp.eq.s32.totalorder %s19, 0
    %p52 = por %p50, %p51
    %p53 = scmp.ne.s32.totalorder %s39, %s40
    %p54 = scmp.eq.s32.totalorder %s20, 3
    %p55 = por %p53, %p54
    %p57 = scmp.ne.s32.totalorder %s40, %s56
    %p58 = scmp.eq.s32.totalorder %s20, 0
    %p59 = por %p57, %p58
    %s60 = ssub.s32 %s21, %s33
    %p61 = scmp.eq.s32.totalorder %s60, 0
    %s63 = sadd.s32 %s62, 1
    %s64 = scalar_select %p61, %s62, %s63
    %p67 = pneg %p61
    %p68 = scmp.eq.s32.totalorder %s14, 3
    %p69 = por %p67, %p68
    %p70 = scmp.ne.s32.totalorder %s62, %s65
    %p71 = scmp.eq.s32.totalorder %s14, 0
    %p72 = por %p70, %p71
    %p73 = scmp.ne.s32.totalorder %s62, %s65
    %p74 = scmp.eq.s32.totalorder %s19, 3
    %p75 = por %p73, %p74
    %p76 = scmp.ne.s32.totalorder %s65, %s66
    %p77 = scmp.eq.s32.totalorder %s19, 0
    %p78 = por %p76, %p77
    %p79 = scmp.ne.s32.totalorder %s65, %s66
    %p80 = scmp.eq.s32.totalorder %s20, 3
    %p81 = por %p79, %p80
    %p83 = scmp.ne.s32.totalorder %s66, %s82
    %p84 = scmp.eq.s32.totalorder %s20, 0
    %p85 = por %p83, %p84
    %s86 = ssub.s32 %s22, %s29
    %p87 = scmp.eq.s32.totalorder %s86, 0
    %s89 = sadd.s32 %s88, 1
    %s90 = scalar_select %p87, %s88, %s89
    %p93 = pneg %p87
    %p94 = scmp.eq.s32.totalorder %s14, 3
    %p95 = por %p93, %p94
    %p96 = scmp.ne.s32.totalorder %s88, %s91
    %p97 = scmp.eq.s32.totalorder %s14, 0
    %p98 = por %p96, %p97
    %p99 = scmp.ne.s32.totalorder %s88, %s91
    %p100 = scmp.eq.s32.totalorder %s19, 3
    %p101 = por %p99, %p100
    %p102 = scmp.ne.s32.totalorder %s91, %s92
    %p103 = scmp.eq.s32.totalorder %s19, 0
    %p104 = por %p102, %p103
    %p105 = scmp.ne.s32.totalorder %s91, %s92
    %p106 = scmp.eq.s32.totalorder %s20, 3
    %p107 = por %p105, %p106
    %p109 = scmp.ne.s32.totalorder %s92, %s108
    %p110 = scmp.eq.s32.totalorder %s20, 0
    %p111 = por %p109, %p110
    %s112 = ssub.s32 %s22, %s29
    %p113 = scmp.eq.s32.totalorder %s112, 0
    %s115 = sadd.s32 %s114, 1
    %s116 = scalar_select %p113, %s114, %s115
    %p119 = pneg %p113
    %p120 = scmp.eq.s32.totalorder %s14, 3
    %p121 = por %p119, %p120
    %p122 = scmp.ne.s32.totalorder %s114, %s117
    %p123 = scmp.eq.s32.totalorder %s14, 0
    %p124 = por %p122, %p123
    %p125 = scmp.ne.s32.totalorder %s114, %s117
    %p126 = scmp.eq.s32.totalorder %s19, 3
    %p127 = por %p125, %p126
    %p128 = scmp.ne.s32.totalorder %s117, %s118
    %p129 = scmp.eq.s32.totalorder %s19, 0
    %p130 = por %p128, %p129
    %p131 = scmp.ne.s32.totalorder %s117, %s118
    %p132 = scmp.eq.s32.totalorder %s20, 3
    %p133 = por %p131, %p132
    %p135 = scmp.ne.s32.totalorder %s118, %s134
    %p136 = scmp.eq.s32.totalorder %s20, 0
    %p137 = por %p135, %p136
    %s138 = ssub.s32 %s22, %s29
    %p139 = scmp.eq.s32.totalorder %s138, 0
    %s141 = sadd.s32 %s140, 1
    %s142 = scalar_select %p139, %s140, %s141
    %p145 = pneg %p139
    %p146 = scmp.eq.s32.totalorder %s14, 3
    %p147 = por %p145, %p146
    %p148 = scmp.ne.s32.totalorder %s140, %s143
    %p149 = scmp.eq.s32.totalorder %s14, 0
    %p150 = por %p148, %p149
    %p151 = scmp.ne.s32.totalorder %s140, %s143
    %p152 = scmp.eq.s32.totalorder %s19, 3
    %p153 = por %p151, %p152
    %p154 = scmp.ne.s32.totalorder %s143, %s144
    %p155 = scmp.eq.s32.totalorder %s19, 0
    %p156 = por %p154, %p155
    %p157 = scmp.ne.s32.totalorder %s143, %s144
    %p158 = scmp.eq.s32.totalorder %s20, 3
    %p159 = por %p157, %p158
    %p161 = scmp.ne.s32.totalorder %s144, %s160
    %p162 = scmp.eq.s32.totalorder %s20, 0
    %p163 = por %p161, %p162
    %s164 = ssub.s32 %s22, %s29
    %p165 = scmp.eq.s32.totalorder %s164, 0
    %s167 = sadd.s32 %s166, 1
    %s168 = scalar_select %p165, %s166, %s167
    %p171 = pneg %p165
    %p172 = scmp.eq.s32.totalorder %s14, 3
    %p173 = por %p171, %p172
    %p174 = scmp.ne.s32.totalorder %s166, %s169
    %p175 = scmp.eq.s32.totalorder %s14, 0
    %p176 = por %p174, %p175
    %p177 = scmp.ne.s32.totalorder %s166, %s169
    %p178 = scmp.eq.s32.totalorder %s19, 3
    %p179 = por %p177, %p178
    %p180 = scmp.ne.s32.totalorder %s169, %s170
    %p181 = scmp.eq.s32.totalorder %s19, 0
    %p182 = por %p180, %p181
    %p183 = scmp.ne.s32.totalorder %s169, %s170
    %p184 = scmp.eq.s32.totalorder %s20, 3
    %p185 = por %p183, %p184
    %p187 = scmp.ne.s32.totalorder %s170, %s186
    %p188 = scmp.eq.s32.totalorder %s20, 0
    %p189 = por %p187, %p188
    %s190 = ssub.s32 %s22, %s29
    %p191 = scmp.eq.s32.totalorder %s190, 0
    %s193 = sadd.s32 %s192, 1
    %s194 = scalar_select %p191, %s192, %s193
    %p197 = pneg %p191
    %p198 = scmp.eq.s32.totalorder %s14, 3
    %p199 = por %p197, %p198
    %p200 = scmp.ne.s32.totalorder %s192, %s195
    %p201 = scmp.eq.s32.totalorder %s14, 0
    %p202 = por %p200, %p201
    %p203 = scmp.ne.s32.totalorder %s192, %s195
    %p204 = scmp.eq.s32.totalorder %s19, 3
    %p205 = por %p203, %p204
    %p206 = scmp.ne.s32.totalorder %s195, %s196
    %p207 = scmp.eq.s32.totalorder %s19, 0
    %p208 = por %p206, %p207
    %p209 = scmp.ne.s32.totalorder %s195, %s196
    %p210 = scmp.eq.s32.totalorder %s20, 3
    %p211 = por %p209, %p210
    %p213 = scmp.ne.s32.totalorder %s196, %s212
    %p214 = scmp.eq.s32.totalorder %s20, 0
    %p215 = por %p213, %p214
    %s216 = ssub.s32 %s22, %s29
    %p217 = scmp.eq.s32.totalorder %s216, 0
    %s219 = sadd.s32 %s218, 1
    %s220 = scalar_select %p217, %s218, %s219
    %p223 = pneg %p217
    %p224 = scmp.eq.s32.totalorder %s14, 3
    %p225 = por %p223, %p224
    %p226 = scmp.ne.s32.totalorder %s218, %s221
    %p227 = scmp.eq.s32.totalorder %s14, 0
    %p228 = por %p226, %p227
    %p229 = scmp.ne.s32.totalorder %s218, %s221
    %p230 = scmp.eq.s32.totalorder %s19, 3
    %p231 = por %p229, %p230
    %p232 = scmp.ne.s32.totalorder %s221, %s222
    %p233 = scmp.eq.s32.totalorder %s19, 0
    %p234 = por %p232, %p233
    %p235 = scmp.ne.s32.totalorder %s221, %s222
    %p236 = scmp.eq.s32.totalorder %s20, 3
    %p237 = por %p235, %p236
    %p239 = scmp.ne.s32.totalorder %s222, %s238
    %p240 = scmp.eq.s32.totalorder %s20, 0
    %p241 = por %p239, %p240
    %s242 = ssub.s32 %s21, %s33
    %p243 = scmp.eq.s32.totalorder %s242, 0
    %s245 = sadd.s32 %s244, 1
    %s246 = scalar_select %p243, %s244, %s245
    %p249 = pneg %p243
    %p250 = scmp.eq.s32.totalorder %s14, 3
    %p251 = por %p249, %p250
    %p252 = scmp.ne.s32.totalorder %s244, %s247
    %p253 = scmp.eq.s32.totalorder %s14, 0
    %p254 = por %p252, %p253
    %p255 = scmp.ne.s32.totalorder %s244, %s247
    %p256 = scmp.eq.s32.totalorder %s19, 3
    %p257 = por %p255, %p256
    %p258 = scmp.ne.s32.totalorder %s247, %s248
    %p259 = scmp.eq.s32.totalorder %s19, 0
    %p260 = por %p258, %p259
    %p261 = scmp.ne.s32.totalorder %s247, %s248
    %p262 = scmp.eq.s32.totalorder %s20, 3
    %p263 = por %p261, %p262
    %p265 = scmp.ne.s32.totalorder %s248, %s264
    %p266 = scmp.eq.s32.totalorder %s20, 0
    %p267 = por %p265, %p266
    %p268 = scmp.le.s32.totalorder 1, %s14
    %p269 = scmp.lt.s32.totalorder %s14, 5
    %p270 = pnand %p268, %p269
    %p271 = pneg %p270
    // Predicated region
    $region9: #{filter_forward.1} parent=5 // pred_check
      _
    $region10: #{filter_forward.1} parent=5 // pred_check_branch
      %273 = sbr.rel (%p270) target = $region12
    $region11: #{filter_forward.1} parent=5 // pred_region
      %s274 = ssub.s32 %s14, 1
    $region12: #{filter_forward.1} parent=5 // pred_fallthru
      _
    %p275 = scmp.lt.s32.totalorder %s14, 4
    // Predicated region
    $region13: #{filter_forward.1} parent=5 // pred_check
      %p276 = pneg %p275
    $region14: #{filter_forward.1} parent=5 // pred_check_branch
      %278 = sbr.rel (%p276) target = $region16
    $region15: #{filter_forward.1} parent=5 // pred_region
      // Predicated region
      $region17: #{filter_forward.1} parent=15 // pred_check
        %p279 = pneg %p46
      $region18: #{filter_forward.1} parent=15 // pred_check_branch
        %281 = sbr.rel (%p279) target = $region20
      $region19: #{filter_forward.1} parent=15 // pred_region
        %p282 = scmp.lt.s32.totalorder %s21, 1
        %s283 = scalar_select %p282, %s21, 1
        %s284 = smul.addr %s283, 2
        %s285 = scalar_lea.vmem %s0, %s284
      $region20: #{filter_forward.1} parent=15 // pred_fallthru
        _
      // Predicated region
      $region21: #{filter_forward.1} parent=15 // pred_check
        %p286 = pneg %p72
      $region22: #{filter_forward.1} parent=15 // pred_check_branch
        %288 = sbr.rel (%p286) target = $region24
      $region23: #{filter_forward.1} parent=15 // pred_region
        %p289 = scmp.lt.s32.totalorder %s21, 1
        %s290 = scalar_select %p289, %s21, 1
        %s291 = smul.addr %s290, 2
        %s292 = smul.addr %s291, 8
        %s293 = scalar_lea.vmem %s1, %s292
      $region24: #{filter_forward.1} parent=15 // pred_fallthru
        _
      // Predicated region
      $region25: #{filter_forward.1} parent=15 // pred_check
        %p294 = pneg %p98
      $region26: #{filter_forward.1} parent=15 // pred_check_branch
        %296 = sbr.rel (%p294) target = $region28
      $region27: #{filter_forward.1} parent=15 // pred_region
        %p297 = scmp.lt.s32.totalorder %s22, 1
        %s298 = scalar_select %p297, %s22, 1
        %s299 = smul.addr %s298, 8
        %s300 = scalar_lea.vmem %s2, %s299
      $region28: #{filter_forward.1} parent=15 // pred_fallthru
        _
      // Predicated region
      $region29: #{filter_forward.1} parent=15 // pred_check
        %p301 = pneg %p124
      $region30: #{filter_forward.1} parent=15 // pred_check_branch
        %303 = sbr.rel (%p301) target = $region32
      $region31: #{filter_forward.1} parent=15 // pred_region
        %p304 = scmp.lt.s32.totalorder %s22, 1
        %s305 = scalar_select %p304, %s22, 1
        %s306 = smul.addr %s305, 8
        %s307 = scalar_lea.vmem %s3, %s306
      $region32: #{filter_forward.1} parent=15 // pred_fallthru
        _
      // Predicated region
      $region33: #{filter_forward.1} parent=15 // pred_check
        %p308 = pneg %p150
      $region34: #{filter_forward.1} parent=15 // pred_check_branch
        %310 = sbr.rel (%p308) target = $region36
      $region35: #{filter_forward.1} parent=15 // pred_region
        %p311 = scmp.lt.s32.totalorder %s22, 1
        %s312 = scalar_select %p311, %s22, 1
        %s313 = smul.addr %s312, 12
        %s314 = smul.addr %s313, 4
        %s315 = scalar_lea.vmem %s4, %s314
      $region36: #{filter_forward.1} parent=15 // pred_fallthru
        _
      // Predicated region
      $region37: #{filter_forward.1} parent=15 // pred_check
        %p316 = pneg %p176
      $region38: #{filter_forward.1} parent=15 // pred_check_branch
        %318 = sbr.rel (%p316) target = $region40
      $region39: #{filter_forward.1} parent=15 // pred_region
        %p319 = scmp.lt.s32.totalorder %s22, 1
        %s320 = scalar_select %p319, %s22, 1
        %s321 = smul.addr %s320, 4
        %s322 = smul.addr %s321, 8
        %s323 = scalar_lea.vmem %s5, %s322
      $region40: #{filter_forward.1} parent=15 // pred_fallthru
        _
      // Predicated region
      $region41: #{filter_forward.1} parent=15 // pred_check
        %p324 = pneg %p202
      $region42: #{filter_forward.1} parent=15 // pred_check_branch
        %326 = sbr.rel (%p324) target = $region44
      $region43: #{filter_forward.1} parent=15 // pred_region
        %p327 = scmp.lt.s32.totalorder %s22, 1
        %s328 = scalar_select %p327, %s22, 1
        %s329 = smul.addr %s328, 8
        %s330 = scalar_lea.vmem %s6, %s329
      $region44: #{filter_forward.1} parent=15 // pred_fallthru
        _
      // Predicated region
      $region45: #{filter_forward.1} parent=15 // pred_check
        %p331 = pneg %p228
      $region46: #{filter_forward.1} parent=15 // pred_check_branch
        %333 = sbr.rel (%p331) target = $region48
      $region47: #{filter_forward.1} parent=15 // pred_region
        %p334 = scmp.lt.s32.totalorder %s22, 1
        %s335 = scalar_select %p334, %s22, 1
        %s336 = scalar_lea.vmem %s7, %s335
      $region48: #{filter_forward.1} parent=15 // pred_fallthru
        _
    $region16: #{filter_forward.1} parent=5 // pred_fallthru
      _
    %p337 = scmp.le.s32.totalorder 1, %s14
    %p338 = scmp.lt.s32.totalorder %s14, 5
    %p339 = pnand %p337, %p338
    %p340 = pneg %p339
    // Predicated region
    $region49: #{filter_forward.1} parent=5 // pred_check
      _
    $region50: #{filter_forward.1} parent=5 // pred_check_branch
      %342 = sbr.rel (%p339) target = $region52
    $region51: #{filter_forward.1} parent=5 // pred_region
      %s343 = ssub.s32 %s14, 1
      %p344 = scmp.lt.s32.totalorder %s23, 1
      %s345 = scalar_select %p344, %s23, 1
      %s346 = smul.addr %s345, 2
      %s347 = scalar_lea.vmem %s0, %s346
      %p348 = pneg %p52
      %p349 = pneg %p49
      %p350 = scmp.lt.s32.totalorder %s23, 1
      %s351 = scalar_select %p350, %s23, 1
      %s352 = smul.addr %s351, 2
      %s353 = smul.addr %s352, 8
      %s354 = scalar_lea.vmem %s1, %s353
      %p355 = pneg %p78
      %p356 = pneg %p75
      %p357 = scmp.lt.s32.totalorder %s24, 1
      %s358 = scalar_select %p357, %s24, 1
      %s359 = smul.addr %s358, 8
      %s360 = scalar_lea.vmem %s2, %s359
      %p361 = pneg %p104
      %p362 = pneg %p101
      %p363 = scmp.lt.s32.totalorder %s24, 1
      %s364 = scalar_select %p363, %s24, 1
      %s365 = smul.addr %s364, 8
      %s366 = scalar_lea.vmem %s3, %s365
      %p367 = pneg %p130
      %p368 = pneg %p127
      %p369 = scmp.lt.s32.totalorder %s24, 1
      %s370 = scalar_select %p369, %s24, 1
      %s371 = smul.addr %s370, 12
      %s372 = smul.addr %s371, 4
      %s373 = scalar_lea.vmem %s4, %s372
      %p374 = pneg %p156
      %p375 = pneg %p153
      %p376 = scmp.lt.s32.totalorder %s24, 1
      %s377 = scalar_select %p376, %s24, 1
      %s378 = smul.addr %s377, 4
      %s379 = smul.addr %s378, 8
      %s380 = scalar_lea.vmem %s5, %s379
      %p381 = pneg %p182
      %p382 = pneg %p179
      %p383 = scmp.lt.s32.totalorder %s24, 1
      %s384 = scalar_select %p383, %s24, 1
      %s385 = smul.addr %s384, 8
      %s386 = scalar_lea.vmem %s6, %s385
      %p387 = pneg %p208
      %p388 = pneg %p205
      %p389 = scmp.lt.s32.totalorder %s24, 1
      %s390 = scalar_select %p389, %s24, 1
      %s391 = scalar_lea.vmem %s7, %s390
      %p392 = pneg %p234
      %p393 = pneg %p231
      %p394 = pneg %p260
      %p395 = pneg %p257
      %p396 = scmp.lt.s32.totalorder %s23, 1
      %s397 = scalar_select %p396, %s23, 1
      %s398 = smul.addr %s397, 2
      %s399 = scalar_lea.vmem %s8, %s398
      %p400 = scmp.lt.s32.totalorder %s23, 1
      %s401 = scalar_select %p400, %s23, 1
      %s402 = smul.addr %s401, 2
      %s403 = scalar_lea.vmem %s0, %s402
      %p404 = scmp.lt.s32.totalorder %s23, 1
      %s405 = scalar_select %p404, %s23, 1
      %s406 = smul.addr %s405, 2
      %s407 = smul.addr %s406, 8
      %s408 = scalar_lea.vmem %s1, %s407
      %p409 = scmp.lt.s32.totalorder %s24, 1
      %s410 = scalar_select %p409, %s24, 1
      %s411 = smul.addr %s410, 8
      %s412 = scalar_lea.vmem %s2, %s411
      %p413 = scmp.lt.s32.totalorder %s24, 1
      %s414 = scalar_select %p413, %s24, 1
      %s415 = smul.addr %s414, 8
      %s416 = scalar_lea.vmem %s3, %s415
      %p417 = scmp.lt.s32.totalorder %s24, 1
      %s418 = scalar_select %p417, %s24, 1
      %s419 = smul.addr %s418, 12
      %s420 = smul.addr %s419, 4
      %s421 = scalar_lea.vmem %s4, %s420
      %p422 = scmp.lt.s32.totalorder %s24, 1
      %s423 = scalar_select %p422, %s24, 1
      %s424 = smul.addr %s423, 4
      %s425 = smul.addr %s424, 8
      %s426 = scalar_lea.vmem %s5, %s425
      %p427 = scmp.lt.s32.totalorder %s24, 1
      %s428 = scalar_select %p427, %s24, 1
      %s429 = smul.addr %s428, 8
      %s430 = scalar_lea.vmem %s6, %s429
      %p431 = scmp.lt.s32.totalorder %s24, 1
      %s432 = scalar_select %p431, %s24, 1
      %s433 = scalar_lea.vmem %s7, %s432
      %p434 = scmp.lt.s32.totalorder %s23, 1
      %s435 = scalar_select %p434, %s23, 1
      %s436 = smul.addr %s435, 2
      %s437 = scalar_lea.vmem %s8, %s436
      %p439 = scmp.eq.s32.totalorder %s24, 0
      // Predicated region
      $region53: #{filter_forward.1} parent=51 // pred_check
        %p440 = pneg %p439
      $region54: #{filter_forward.1} parent=51 // pred_check_branch
        %442 = sbr.rel (%p440) target = $region56
      $region55: #{filter_forward.1} parent=51 // pred_region
        %v443 = vld [vmem:[%s403] sm:$0x3]
        %v444 = vlaneseq
        %vm445 = vcmp.ge.s32.totalorder %v444, 0
        %vm446 = vcmp.lt.s32.totalorder %v444, 256
        %vm447 = vmand %vm445, %vm446
        %448 = vst.msk [vmem:[%s437] sm:$0x3] %vm447, %v443
      $region56: #{filter_forward.1} parent=51 // pred_fallthru
        _
      %v449 = vld [vmem:[%s408] sm:$0xff]
      %v450 = vld [vmem:[%s408 + $0x8] sm:$0xff]
      %v451 = vld [vmem:[%s437] sm:$0x3]
      %v452 = vlaneseq
      %v453 = vand.u32 %v452, 127
      %v454 = vadd.s32 %v453, 128
      %v455 = vld [vmem:[%s412] sm:$0xff]
      %457 = vset.pattern.permute.xlu0 0
      %458 = vperm.xlu0 %457, %v455
      %v459 = vpop.permute.xlu0 %458
      %v462 = vlaneseq
      %v463 = vshrl.u32 %v462, 7
      %v464 = vsub.s32 0, %v463
      %v465 = vrot.slane %v451, %v464
      %v466 = vlaneseq
      %v467 = vshrl.u32 %v466, 7
      %v468 = vsub.s32 1, %v467
      %v469 = vrot.slane %v451, %v468
      %v472 = vmul.f32 %v459, %v465
      %v473 = vmul.f32 %v459, %v469
      %v474 = vld [vmem:[%s416] sm:$0xff]
      %476 = vset.pattern.permute.xlu0 0
      %477 = vperm.xlu0 %476, %v474
      %v478 = vpop.permute.xlu0 %477
      %v480 = vadd.f32 %v472, %v478
      %v481 = vadd.f32 %v473, %v478
      %v482 = vld [vmem:[%s421] sm:$0xf]
      %v483 = vpack.c.bf16 %v480, %v480
      %v484 = vpack.c.bf16 %v481, %v481
      %485 = vrot.lane.b32.xlu0 %v480, 1
      %v486 = vpop.permute.xlu0 %485
      %487 = vrot.lane.b32.xlu0 %v481, 1
      %v488 = vpop.permute.xlu0 %487
      %vm489 = vcmp.lt.s32.totalorder %v453, 1
      %v490 = vsel %vm489, %v486, %v488
      %v491 = vsel %vm489, %v488, %v486
      %s492 = scalar_lea.vmem %s421, 4
      %v493 = vld [vmem:[%s492] sm:$0xf]
      %v494 = vpack.c.bf16 %v491, %v491
      %v495 = vpack.c.bf16 %v490, %v490
      %vm496 = vcmask 64512
      %v498 = vsel %vm496, %v493, 0
      %vm500 = vcmask 1043456
      %v502 = vsel %vm500, %v494, 0
      %v505 = vsel %vm500, %v495, 0
      %507 = vmatprep.subr.bf16.mxu0 %v505
      %508 = vmatpush1.bf16.msra.mxu0 %v502
      %509 = vmatprep.subr.bf16.mxu0 0
      %510 = vmatpush1.bf16.msra.mxu0 0
      %511 = vmatprep.subr.bf16.mxu0 0
      %512 = vmatpush1.bf16.msra.mxu0 0
      %513 = vmatprep.subr.bf16.mxu0 0
      %514 = vmatpush1.bf16.msra.mxu0 0
      %515 = vmatprep.subr.bf16.mxu0 0
      %516 = vmatpush1.bf16.msra.mxu0 0
      %517 = vmatprep.subr.bf16.mxu0 0
      %518 = vmatpush1.bf16.msra.mxu0 0
      %519 = vmatprep.subr.bf16.mxu0 0
      %520 = vmatpush1.bf16.msra.mxu0 0
      %521 = vmatprep.subr.bf16.mxu0 0
      %522 = vmatpush1.bf16.msra.mxu0 0
      %523 = vmatprep.subr.bf16.mxu0 0
      %524 = vmatpush1.bf16.msra.mxu0 0
      %525 = vmatprep.subr.bf16.mxu0 0
      %526 = vmatpush1.bf16.msra.mxu0 0
      %527 = vmatprep.subr.bf16.mxu0 0
      %528 = vmatpush1.bf16.msra.mxu0 0
      %529 = vmatprep.subr.bf16.mxu0 0
      %530 = vmatpush1.bf16.msra.mxu0 0
      %531 = vmatprep.subr.bf16.mxu0 0
      %532 = vmatpush1.bf16.msra.mxu0 0
      %533 = vmatprep.subr.bf16.mxu0 0
      %534 = vmatpush1.bf16.msra.mxu0 0
      %535 = vmatprep.subr.bf16.mxu0 0
      %536 = vmatpush1.bf16.msra.mxu0 0
      %537 = vmatprep.subr.bf16.mxu0 0
      %538 = vmatpush1.bf16.msra.mxu0 0
      %539 = vmatprep.mubr.bf16.mxu0 0
      %540 = vmatmul.mubr.bf16.gmra.mrb[0].mxu0 %v498
      %v541 = vpop.f32.mrb[0].mxu0
      %v542 = vadd.f32 0.0, %v541
      %v543 = vpop.f32.mrb[0].mxu0
      %v544 = vadd.f32 0.0, %v543
      %v545 = vpop.f32.mrb[0].mxu0
      %v546 = vpop.f32.mrb[0].mxu0
      %547 = vdwg.mxu0
      %v549 = vsel %vm496, %v482, 0
      %v552 = vsel %vm500, %v483, 0
      %v555 = vsel %vm500, %v484, 0
      %557 = vmatprep.subr.bf16.mxu0 %v555
      %558 = vmatpush1.bf16.msra.mxu0 %v552
      %559 = vmatprep.subr.bf16.mxu0 0
      %560 = vmatpush1.bf16.msra.mxu0 0
      %561 = vmatprep.subr.bf16.mxu0 0
      %562 = vmatpush1.bf16.msra.mxu0 0
      %563 = vmatprep.subr.bf16.mxu0 0
      %564 = vmatpush1.bf16.msra.mxu0 0
      %565 = vmatprep.subr.bf16.mxu0 0
      %566 = vmatpush1.bf16.msra.mxu0 0
      %567 = vmatprep.subr.bf16.mxu0 0
      %568 = vmatpush1.bf16.msra.mxu0 0
      %569 = vmatprep.subr.bf16.mxu0 0
      %570 = vmatpush1.bf16.msra.mxu0 0
      %571 = vmatprep.subr.bf16.mxu0 0
      %572 = vmatpush1.bf16.msra.mxu0 0
      %573 = vmatprep.subr.bf16.mxu0 0
      %574 = vmatpush1.bf16.msra.mxu0 0
      %575 = vmatprep.subr.bf16.mxu0 0
      %576 = vmatpush1.bf16.msra.mxu0 0
      %577 = vmatprep.subr.bf16.mxu0 0
      %578 = vmatpush1.bf16.msra.mxu0 0
      %579 = vmatprep.subr.bf16.mxu0 0
      %580 = vmatpush1.bf16.msra.mxu0 0
      %581 = vmatprep.subr.bf16.mxu0 0
      %582 = vmatpush1.bf16.msra.mxu0 0
      %583 = vmatprep.subr.bf16.mxu0 0
      %584 = vmatpush1.bf16.msra.mxu0 0
      %585 = vmatprep.subr.bf16.mxu0 0
      %586 = vmatpush1.bf16.msra.mxu0 0
      %587 = vmatprep.subr.bf16.mxu0 0
      %588 = vmatpush1.bf16.msra.mxu0 0
      %589 = vmatprep.mubr.bf16.mxu0 0
      %590 = vmatmul.mubr.bf16.gmra.mrb[0].mxu0 %v549
      %v591 = vpop.f32.mrb[0].mxu0
      %v592 = vadd.f32 %v542, %v591
      %v593 = vpop.f32.mrb[0].mxu0
      %v594 = vadd.f32 %v544, %v593
      %v595 = vpop.f32.mrb[0].mxu0
      %v596 = vpop.f32.mrb[0].mxu0
      %597 = vdwg.mxu0
      %598 = vrot.lane.b32.xlu0 %v480, 2
      %v599 = vpop.permute.xlu0 %598
      %600 = vrot.lane.b32.xlu0 %v481, 2
      %v601 = vpop.permute.xlu0 %600
      %vm602 = vcmp.lt.s32.totalorder %v453, 2
      %v603 = vsel %vm602, %v599, %v601
      %v604 = vsel %vm602, %v601, %v599
      %s605 = scalar_lea.vmem %s421, 8
      %v606 = vld [vmem:[%s605] sm:$0xf]
      %v607 = vpack.c.bf16 %v604, %v604
      %v608 = vpack.c.bf16 %v603, %v603
      %v610 = vsel %vm496, %v606, 0
      %v613 = vsel %vm500, %v607, 0
      %v616 = vsel %vm500, %v608, 0
      %618 = vmatprep.subr.bf16.mxu0 %v616
      %619 = vmatpush1.bf16.msra.mxu0 %v613
      %620 = vmatprep.subr.bf16.mxu0 0
      %621 = vmatpush1.bf16.msra.mxu0 0
      %622 = vmatprep.subr.bf16.mxu0 0
      %623 = vmatpush1.bf16.msra.mxu0 0
      %624 = vmatprep.subr.bf16.mxu0 0
      %625 = vmatpush1.bf16.msra.mxu0 0
      %626 = vmatprep.subr.bf16.mxu0 0
      %627 = vmatpush1.bf16.msra.mxu0 0
      %628 = vmatprep.subr.bf16.mxu0 0
      %629 = vmatpush1.bf16.msra.mxu0 0
      %630 = vmatprep.subr.bf16.mxu0 0
      %631 = vmatpush1.bf16.msra.mxu0 0
      %632 = vmatprep.subr.bf16.mxu0 0
      %633 = vmatpush1.bf16.msra.mxu0 0
      %634 = vmatprep.subr.bf16.mxu0 0
      %635 = vmatpush1.bf16.msra.mxu0 0
      %636 = vmatprep.subr.bf16.mxu0 0
      %637 = vmatpush1.bf16.msra.mxu0 0
      %638 = vmatprep.subr.bf16.mxu0 0
      %639 = vmatpush1.bf16.msra.mxu0 0
      %640 = vmatprep.subr.bf16.mxu0 0
      %641 = vmatpush1.bf16.msra.mxu0 0
      %642 = vmatprep.subr.bf16.mxu0 0
      %643 = vmatpush1.bf16.msra.mxu0 0
      %644 = vmatprep.subr.bf16.mxu0 0
      %645 = vmatpush1.bf16.msra.mxu0 0
      %646 = vmatprep.subr.bf16.mxu0 0
      %647 = vmatpush1.bf16.msra.mxu0 0
      %648 = vmatprep.subr.bf16.mxu0 0
      %649 = vmatpush1.bf16.msra.mxu0 0
      %650 = vmatprep.mubr.bf16.mxu0 0
      %651 = vmatmul.mubr.bf16.gmra.mrb[0].mxu0 %v610
      %v652 = vpop.f32.mrb[0].mxu0
      %v653 = vadd.f32 0.0, %v652
      %v654 = vpop.f32.mrb[0].mxu0
      %v655 = vadd.f32 0.0, %v654
      %v656 = vpop.f32.mrb[0].mxu0
      %v657 = vpop.f32.mrb[0].mxu0
      %658 = vdwg.mxu0
      %v659 = vadd.f32 %v592, %v653
      %v660 = vadd.f32 %v594, %v655
      %v661 = vld [vmem:[%s426] sm:$0xff]
      %663 = vset.pattern.permute.xlu0 0
      %664 = vperm.xlu0 %663, %v661
      %v665 = vpop.permute.xlu0 %664
      %v667 = vadd.f32 %v659, %v665
      %v668 = vadd.f32 %v660, %v665
      %vm669 = vcmp.ge.s32.totalorder %v453, 2
      %vm670 = vcmp.ge.s32.totalorder %v454, 2
      %v671 = vsel %vm669, 1, 0
      %v672 = vsel %vm670, 1, 0
      %vm673 = vcmp.eq.s32.totalorder %v671, 1
      %vm674 = vcmp.eq.s32.totalorder %v672, 1
      %v675 = vsel %vm673, %v667, 0.0
      %v676 = vsel %vm674, %v668, 0.0
      %v677 = vtanh.pop %v675
      %v678 = vtanh.pop %v676
      %v679 = vadd.f32 %v677, %v480
      %v680 = vadd.f32 %v678, %v481
      %v681 = vadd.f32 %v679, %v449
      %v682 = vadd.f32 %v680, %v450
      %s683 = scalar_lea.vmem %s421, 12
      %v684 = vld [vmem:[%s683] sm:$0xf]
      %v685 = vpack.c.bf16 %v681, %v681
      %v686 = vpack.c.bf16 %v682, %v682
      %687 = vrot.lane.b32.xlu0 %v681, 2
      %v688 = vpop.permute.xlu0 %687
      %689 = vrot.lane.b32.xlu0 %v682, 2
      %v690 = vpop.permute.xlu0 %689
      %v691 = vsel %vm602, %v688, %v690
      %v692 = vsel %vm602, %v690, %v688
      %s693 = scalar_lea.vmem %s421, 16
      %v694 = vld [vmem:[%s693] sm:$0xf]
      %v695 = vpack.c.bf16 %v692, %v692
      %v696 = vpack.c.bf16 %v691, %v691
      %v698 = vsel %vm496, %v694, 0
      %v701 = vsel %vm500, %v695, 0
      %v704 = vsel %vm500, %v696, 0
      %706 = vmatprep.subr.bf16.mxu0 %v704
      %707 = vmatpush1.bf16.msra.mxu0 %v701
      %708 = vmatprep.subr.bf16.mxu0 0
      %709 = vmatpush1.bf16.msra.mxu0 0
      %710 = vmatprep.subr.bf16.mxu0 0
      %711 = vmatpush1.bf16.msra.mxu0 0
      %712 = vmatprep.subr.bf16.mxu0 0
      %713 = vmatpush1.bf16.msra.mxu0 0
      %714 = vmatprep.subr.bf16.mxu0 0
      %715 = vmatpush1.bf16.msra.mxu0 0
      %716 = vmatprep.subr.bf16.mxu0 0
      %717 = vmatpush1.bf16.msra.mxu0 0
      %718 = vmatprep.subr.bf16.mxu0 0
      %719 = vmatpush1.bf16.msra.mxu0 0
      %720 = vmatprep.subr.bf16.mxu0 0
      %721 = vmatpush1.bf16.msra.mxu0 0
      %722 = vmatprep.subr.bf16.mxu0 0
      %723 = vmatpush1.bf16.msra.mxu0 0
      %724 = vmatprep.subr.bf16.mxu0 0
      %725 = vmatpush1.bf16.msra.mxu0 0
      %726 = vmatprep.subr.bf16.mxu0 0
      %727 = vmatpush1.bf16.msra.mxu0 0
      %728 = vmatprep.subr.bf16.mxu0 0
      %729 = vmatpush1.bf16.msra.mxu0 0
      %730 = vmatprep.subr.bf16.mxu0 0
      %731 = vmatpush1.bf16.msra.mxu0 0
      %732 = vmatprep.subr.bf16.mxu0 0
      %733 = vmatpush1.bf16.msra.mxu0 0
      %734 = vmatprep.subr.bf16.mxu0 0
      %735 = vmatpush1.bf16.msra.mxu0 0
      %736 = vmatprep.subr.bf16.mxu0 0
      %737 = vmatpush1.bf16.msra.mxu0 0
      %738 = vmatprep.mubr.bf16.mxu0 0
      %739 = vmatmul.mubr.bf16.gmra.mrb[0].mxu0 %v698
      %v740 = vpop.f32.mrb[0].mxu0
      %v741 = vadd.f32 0.0, %v740
      %v742 = vpop.f32.mrb[0].mxu0
      %v743 = vadd.f32 0.0, %v742
      %v744 = vpop.f32.mrb[0].mxu0
      %v745 = vpop.f32.mrb[0].mxu0
      %746 = vdwg.mxu0
      %v748 = vsel %vm496, %v684, 0
      %v751 = vsel %vm500, %v685, 0
      %v754 = vsel %vm500, %v686, 0
      %756 = vmatprep.subr.bf16.mxu0 %v754
      %757 = vmatpush1.bf16.msra.mxu0 %v751
      %758 = vmatprep.subr.bf16.mxu0 0
      %759 = vmatpush1.bf16.msra.mxu0 0
      %760 = vmatprep.subr.bf16.mxu0 0
      %761 = vmatpush1.bf16.msra.mxu0 0
      %762 = vmatprep.subr.bf16.mxu0 0
      %763 = vmatpush1.bf16.msra.mxu0 0
      %764 = vmatprep.subr.bf16.mxu0 0
      %765 = vmatpush1.bf16.msra.mxu0 0
      %766 = vmatprep.subr.bf16.mxu0 0
      %767 = vmatpush1.bf16.msra.mxu0 0
      %768 = vmatprep.subr.bf16.mxu0 0
      %769 = vmatpush1.bf16.msra.mxu0 0
      %770 = vmatprep.subr.bf16.mxu0 0
      %771 = vmatpush1.bf16.msra.mxu0 0
      %772 = vmatprep.subr.bf16.mxu0 0
      %773 = vmatpush1.bf16.msra.mxu0 0
      %774 = vmatprep.subr.bf16.mxu0 0
      %775 = vmatpush1.bf16.msra.mxu0 0
      %776 = vmatprep.subr.bf16.mxu0 0
      %777 = vmatpush1.bf16.msra.mxu0 0
      %778 = vmatprep.subr.bf16.mxu0 0
      %779 = vmatpush1.bf16.msra.mxu0 0
      %780 = vmatprep.subr.bf16.mxu0 0
      %781 = vmatpush1.bf16.msra.mxu0 0
      %782 = vmatprep.subr.bf16.mxu0 0
      %783 = vmatpush1.bf16.msra.mxu0 0
      %784 = vmatprep.subr.bf16.mxu0 0
      %785 = vmatpush1.bf16.msra.mxu0 0
      %786 = vmatprep.subr.bf16.mxu0 0
      %787 = vmatpush1.bf16.msra.mxu0 0
      %788 = vmatprep.mubr.bf16.mxu0 0
      %789 = vmatmul.mubr.bf16.gmra.mrb[0].mxu0 %v748
      %v790 = vpop.f32.mrb[0].mxu0
      %v791 = vadd.f32 %v741, %v790
      %v792 = vpop.f32.mrb[0].mxu0
      %v793 = vadd.f32 %v743, %v792
      %v794 = vpop.f32.mrb[0].mxu0
      %v795 = vpop.f32.mrb[0].mxu0
      %796 = vdwg.mxu0
      %797 = vrot.lane.b32.xlu0 %v681, 4
      %v798 = vpop.permute.xlu0 %797
      %799 = vrot.lane.b32.xlu0 %v682, 4
      %v800 = vpop.permute.xlu0 %799
      %vm801 = vcmp.lt.s32.totalorder %v453, 4
      %v802 = vsel %vm801, %v798, %v800
      %v803 = vsel %vm801, %v800, %v798
      %s804 = scalar_lea.vmem %s421, 20
      %v805 = vld [vmem:[%s804] sm:$0xf]
      %v806 = vpack.c.bf16 %v803, %v803
      %v807 = vpack.c.bf16 %v802, %v802
      %v809 = vsel %vm496, %v805, 0
      %v812 = vsel %vm500, %v806, 0
      %v815 = vsel %vm500, %v807, 0
      %817 = vmatprep.subr.bf16.mxu0 %v815
      %818 = vmatpush1.bf16.msra.mxu0 %v812
      %819 = vmatprep.subr.bf16.mxu0 0
      %820 = vmatpush1.bf16.msra.mxu0 0
      %821 = vmatprep.subr.bf16.mxu0 0
      %822 = vmatpush1.bf16.msra.mxu0 0
      %823 = vmatprep.subr.bf16.mxu0 0
      %824 = vmatpush1.bf16.msra.mxu0 0
      %825 = vmatprep.subr.bf16.mxu0 0
      %826 = vmatpush1.bf16.msra.mxu0 0
      %827 = vmatprep.subr.bf16.mxu0 0
      %828 = vmatpush1.bf16.msra.mxu0 0
      %829 = vmatprep.subr.bf16.mxu0 0
      %830 = vmatpush1.bf16.msra.mxu0 0
      %831 = vmatprep.subr.bf16.mxu0 0
      %832 = vmatpush1.bf16.msra.mxu0 0
      %833 = vmatprep.subr.bf16.mxu0 0
      %834 = vmatpush1.bf16.msra.mxu0 0
      %835 = vmatprep.subr.bf16.mxu0 0
      %836 = vmatpush1.bf16.msra.mxu0 0
      %837 = vmatprep.subr.bf16.mxu0 0
      %838 = vmatpush1.bf16.msra.mxu0 0
      %839 = vmatprep.subr.bf16.mxu0 0
      %840 = vmatpush1.bf16.msra.mxu0 0
      %841 = vmatprep.subr.bf16.mxu0 0
      %842 = vmatpush1.bf16.msra.mxu0 0
      %843 = vmatprep.subr.bf16.mxu0 0
      %844 = vmatpush1.bf16.msra.mxu0 0
      %845 = vmatprep.subr.bf16.mxu0 0
      %846 = vmatpush1.bf16.msra.mxu0 0
      %847 = vmatprep.subr.bf16.mxu0 0
      %848 = vmatpush1.bf16.msra.mxu0 0
      %849 = vmatprep.mubr.bf16.mxu0 0
      %850 = vmatmul.mubr.bf16.gmra.mrb[0].mxu0 %v809
      %v851 = vpop.f32.mrb[0].mxu0
      %v852 = vadd.f32 0.0, %v851
      %v853 = vpop.f32.mrb[0].mxu0
      %v854 = vadd.f32 0.0, %v853
      %v855 = vpop.f32.mrb[0].mxu0
      %v856 = vpop.f32.mrb[0].mxu0
      %857 = vdwg.mxu0
      %v858 = vadd.f32 %v791, %v852
      %v859 = vadd.f32 %v793, %v854
      %s860 = scalar_lea.vmem %s426, 8
      %v861 = vld [vmem:[%s860] sm:$0xff]
      %863 = vset.pattern.permute.xlu0 0
      %864 = vperm.xlu0 %863, %v861
      %v865 = vpop.permute.xlu0 %864
      %v867 = vadd.f32 %v858, %v865
      %v868 = vadd.f32 %v859, %v865
      %vm869 = vcmp.ge.s32.totalorder %v453, 4
      %vm870 = vcmp.ge.s32.totalorder %v454, 4
      %v871 = vsel %vm869, 1, 0
      %v872 = vsel %vm870, 1, 0
      %vm873 = vcmp.eq.s32.totalorder %v871, 1
      %vm874 = vcmp.eq.s32.totalorder %v872, 1
      %v875 = vsel %vm873, %v867, 0.0
      %v876 = vsel %vm874, %v868, 0.0
      %v877 = vtanh.pop %v875
      %v878 = vtanh.pop %v876
      %v879 = vadd.f32 %v877, %v681
      %v880 = vadd.f32 %v878, %v682
      %v881 = vadd.f32 %v879, %v449
      %v882 = vadd.f32 %v880, %v450
      %s883 = scalar_lea.vmem %s421, 24
      %v884 = vld [vmem:[%s883] sm:$0xf]
      %v885 = vpack.c.bf16 %v881, %v881
      %v886 = vpack.c.bf16 %v882, %v882
      %887 = vrot.lane.b32.xlu0 %v881, 4
      %v888 = vpop.permute.xlu0 %887
      %889 = vrot.lane.b32.xlu0 %v882, 4
      %v890 = vpop.permute.xlu0 %889
      %v891 = vsel %vm801, %v888, %v890
      %v892 = vsel %vm801, %v890, %v888
      %s893 = scalar_lea.vmem %s421, 28
      %v894 = vld [vmem:[%s893] sm:$0xf]
      %v895 = vpack.c.bf16 %v892, %v892
      %v896 = vpack.c.bf16 %v891, %v891
      %v898 = vsel %vm496, %v894, 0
      %v901 = vsel %vm500, %v895, 0
      %v904 = vsel %vm500, %v896, 0
      %906 = vmatprep.subr.bf16.mxu0 %v904
      %907 = vmatpush1.bf16.msra.mxu0 %v901
      %908 = vmatprep.subr.bf16.mxu0 0
      %909 = vmatpush1.bf16.msra.mxu0 0
      %910 = vmatprep.subr.bf16.mxu0 0
      %911 = vmatpush1.bf16.msra.mxu0 0
      %912 = vmatprep.subr.bf16.mxu0 0
      %913 = vmatpush1.bf16.msra.mxu0 0
      %914 = vmatprep.subr.bf16.mxu0 0
      %915 = vmatpush1.bf16.msra.mxu0 0
      %916 = vmatprep.subr.bf16.mxu0 0
      %917 = vmatpush1.bf16.msra.mxu0 0
      %918 = vmatprep.subr.bf16.mxu0 0
      %919 = vmatpush1.bf16.msra.mxu0 0
      %920 = vmatprep.subr.bf16.mxu0 0
      %921 = vmatpush1.bf16.msra.mxu0 0
      %922 = vmatprep.subr.bf16.mxu0 0
      %923 = vmatpush1.bf16.msra.mxu0 0
      %924 = vmatprep.subr.bf16.mxu0 0
      %925 = vmatpush1.bf16.msra.mxu0 0
      %926 = vmatprep.subr.bf16.mxu0 0
      %927 = vmatpush1.bf16.msra.mxu0 0
      %928 = vmatprep.subr.bf16.mxu0 0
      %929 = vmatpush1.bf16.msra.mxu0 0
      %930 = vmatprep.subr.bf16.mxu0 0
      %931 = vmatpush1.bf16.msra.mxu0 0
      %932 = vmatprep.subr.bf16.mxu0 0
      %933 = vmatpush1.bf16.msra.mxu0 0
      %934 = vmatprep.subr.bf16.mxu0 0
      %935 = vmatpush1.bf16.msra.mxu0 0
      %936 = vmatprep.subr.bf16.mxu0 0
      %937 = vmatpush1.bf16.msra.mxu0 0
      %938 = vmatprep.mubr.bf16.mxu0 0
      %939 = vmatmul.mubr.bf16.gmra.mrb[0].mxu0 %v898
      %v940 = vpop.f32.mrb[0].mxu0
      %v941 = vadd.f32 0.0, %v940
      %v942 = vpop.f32.mrb[0].mxu0
      %v943 = vadd.f32 0.0, %v942
      %v944 = vpop.f32.mrb[0].mxu0
      %v945 = vpop.f32.mrb[0].mxu0
      %946 = vdwg.mxu0
      %v948 = vsel %vm496, %v884, 0
      %v951 = vsel %vm500, %v885, 0
      %v954 = vsel %vm500, %v886, 0
      %956 = vmatprep.subr.bf16.mxu0 %v954
      %957 = vmatpush1.bf16.msra.mxu0 %v951
      %958 = vmatprep.subr.bf16.mxu0 0
      %959 = vmatpush1.bf16.msra.mxu0 0
      %960 = vmatprep.subr.bf16.mxu0 0
      %961 = vmatpush1.bf16.msra.mxu0 0
      %962 = vmatprep.subr.bf16.mxu0 0
      %963 = vmatpush1.bf16.msra.mxu0 0
      %964 = vmatprep.subr.bf16.mxu0 0
      %965 = vmatpush1.bf16.msra.mxu0 0
      %966 = vmatprep.subr.bf16.mxu0 0
      %967 = vmatpush1.bf16.msra.mxu0 0
      %968 = vmatprep.subr.bf16.mxu0 0
      %969 = vmatpush1.bf16.msra.mxu0 0
      %970 = vmatprep.subr.bf16.mxu0 0
      %971 = vmatpush1.bf16.msra.mxu0 0
      %972 = vmatprep.subr.bf16.mxu0 0
      %973 = vmatpush1.bf16.msra.mxu0 0
      %974 = vmatprep.subr.bf16.mxu0 0
      %975 = vmatpush1.bf16.msra.mxu0 0
      %976 = vmatprep.subr.bf16.mxu0 0
      %977 = vmatpush1.bf16.msra.mxu0 0
      %978 = vmatprep.subr.bf16.mxu0 0
      %979 = vmatpush1.bf16.msra.mxu0 0
      %980 = vmatprep.subr.bf16.mxu0 0
      %981 = vmatpush1.bf16.msra.mxu0 0
      %982 = vmatprep.subr.bf16.mxu0 0
      %983 = vmatpush1.bf16.msra.mxu0 0
      %984 = vmatprep.subr.bf16.mxu0 0
      %985 = vmatpush1.bf16.msra.mxu0 0
      %986 = vmatprep.subr.bf16.mxu0 0
      %987 = vmatpush1.bf16.msra.mxu0 0
      %988 = vmatprep.mubr.bf16.mxu0 0
      %989 = vmatmul.mubr.bf16.gmra.mrb[0].mxu0 %v948
      %v990 = vpop.f32.mrb[0].mxu0
      %v991 = vadd.f32 %v941, %v990
      %v992 = vpop.f32.mrb[0].mxu0
      %v993 = vadd.f32 %v943, %v992
      %v994 = vpop.f32.mrb[0].mxu0
      %v995 = vpop.f32.mrb[0].mxu0
      %996 = vdwg.mxu0
      %997 = vrot.lane.b32.xlu0 %v881, 8
      %v998 = vpop.permute.xlu0 %997
      %999 = vrot.lane.b32.xlu0 %v882, 8
      %v1000 = vpop.permute.xlu0 %999
      %vm1001 = vcmp.lt.s32.totalorder %v453, 8
      %v1002 = vsel %vm1001, %v998, %v1000
      %v1003 = vsel %vm1001, %v1000, %v998
      %s1004 = scalar_lea.vmem %s421, 32
      %v1005 = vld [vmem:[%s1004] sm:$0xf]
      %v1006 = vpack.c.bf16 %v1003, %v1003
      %v1007 = vpack.c.bf16 %v1002, %v1002
      %v1009 = vsel %vm496, %v1005, 0
      %v1012 = vsel %vm500, %v1006, 0
      %v1015 = vsel %vm500, %v1007, 0
      %1017 = vmatprep.subr.bf16.mxu0 %v1015
      %1018 = vmatpush1.bf16.msra.mxu0 %v1012
      %1019 = vmatprep.subr.bf16.mxu0 0
      %1020 = vmatpush1.bf16.msra.mxu0 0
      %1021 = vmatprep.subr.bf16.mxu0 0
      %1022 = vmatpush1.bf16.msra.mxu0 0
      %1023 = vmatprep.subr.bf16.mxu0 0
      %1024 = vmatpush1.bf16.msra.mxu0 0
      %1025 = vmatprep.subr.bf16.mxu0 0
      %1026 = vmatpush1.bf16.msra.mxu0 0
      %1027 = vmatprep.subr.bf16.mxu0 0
      %1028 = vmatpush1.bf16.msra.mxu0 0
      %1029 = vmatprep.subr.bf16.mxu0 0
      %1030 = vmatpush1.bf16.msra.mxu0 0
      %1031 = vmatprep.subr.bf16.mxu0 0
      %1032 = vmatpush1.bf16.msra.mxu0 0
      %1033 = vmatprep.subr.bf16.mxu0 0
      %1034 = vmatpush1.bf16.msra.mxu0 0
      %1035 = vmatprep.subr.bf16.mxu0 0
      %1036 = vmatpush1.bf16.msra.mxu0 0
      %1037 = vmatprep.subr.bf16.mxu0 0
      %1038 = vmatpush1.bf16.msra.mxu0 0
      %1039 = vmatprep.subr.bf16.mxu0 0
      %1040 = vmatpush1.bf16.msra.mxu0 0
      %1041 = vmatprep.subr.bf16.mxu0 0
      %1042 = vmatpush1.bf16.msra.mxu0 0
      %1043 = vmatprep.subr.bf16.mxu0 0
      %1044 = vmatpush1.bf16.msra.mxu0 0
      %1045 = vmatprep.subr.bf16.mxu0 0
      %1046 = vmatpush1.bf16.msra.mxu0 0
      %1047 = vmatprep.subr.bf16.mxu0 0
      %1048 = vmatpush1.bf16.msra.mxu0 0
      %1049 = vmatprep.mubr.bf16.mxu0 0
      %1050 = vmatmul.mubr.bf16.gmra.mrb[0].mxu0 %v1009
      %v1051 = vpop.f32.mrb[0].mxu0
      %v1052 = vadd.f32 0.0, %v1051
      %v1053 = vpop.f32.mrb[0].mxu0
      %v1054 = vadd.f32 0.0, %v1053
      %v1055 = vpop.f32.mrb[0].mxu0
      %v1056 = vpop.f32.mrb[0].mxu0
      %1057 = vdwg.mxu0
      %v1058 = vadd.f32 %v991, %v1052
      %v1059 = vadd.f32 %v993, %v1054
      %s1060 = scalar_lea.vmem %s426, 16
      %v1061 = vld [vmem:[%s1060] sm:$0xff]
      %1063 = vset.pattern.permute.xlu0 0
      %1064 = vperm.xlu0 %1063, %v1061
      %v1065 = vpop.permute.xlu0 %1064
      %v1067 = vadd.f32 %v1058, %v1065
      %v1068 = vadd.f32 %v1059, %v1065
      %vm1069 = vcmp.ge.s32.totalorder %v453, 8
      %vm1070 = vcmp.ge.s32.totalorder %v454, 8
      %v1071 = vsel %vm1069, 1, 0
      %v1072 = vsel %vm1070, 1, 0
      %vm1073 = vcmp.eq.s32.totalorder %v1071, 1
      %vm1074 = vcmp.eq.s32.totalorder %v1072, 1
      %v1075 = vsel %vm1073, %v1067, 0.0
      %v1076 = vsel %vm1074, %v1068, 0.0
      %v1077 = vtanh.pop %v1075
      %v1078 = vtanh.pop %v1076
      %v1079 = vadd.f32 %v1077, %v881
      %v1080 = vadd.f32 %v1078, %v882
      %v1081 = vadd.f32 %v1079, %v449
      %v1082 = vadd.f32 %v1080, %v450
      %s1083 = scalar_lea.vmem %s421, 36
      %v1084 = vld [vmem:[%s1083] sm:$0xf]
      %v1085 = vpack.c.bf16 %v1081, %v1081
      %v1086 = vpack.c.bf16 %v1082, %v1082
      %1087 = vrot.lane.b32.xlu0 %v1081, 8
      %v1088 = vpop.permute.xlu0 %1087
      %1089 = vrot.lane.b32.xlu0 %v1082, 8
      %v1090 = vpop.permute.xlu0 %1089
      %v1091 = vsel %vm1001, %v1088, %v1090
      %v1092 = vsel %vm1001, %v1090, %v1088
      %s1093 = scalar_lea.vmem %s421, 40
      %v1094 = vld [vmem:[%s1093] sm:$0xf]
      %v1095 = vpack.c.bf16 %v1092, %v1092
      %v1096 = vpack.c.bf16 %v1091, %v1091
      %v1098 = vsel %vm496, %v1094, 0
      %v1101 = vsel %vm500, %v1095, 0
      %v1104 = vsel %vm500, %v1096, 0
      %1106 = vmatprep.subr.bf16.mxu0 %v1104
      %1107 = vmatpush1.bf16.msra.mxu0 %v1101
      %1108 = vmatprep.subr.bf16.mxu0 0
      %1109 = vmatpush1.bf16.msra.mxu0 0
      %1110 = vmatprep.subr.bf16.mxu0 0
      %1111 = vmatpush1.bf16.msra.mxu0 0
      %1112 = vmatprep.subr.bf16.mxu0 0
      %1113 = vmatpush1.bf16.msra.mxu0 0
      %1114 = vmatprep.subr.bf16.mxu0 0
      %1115 = vmatpush1.bf16.msra.mxu0 0
      %1116 = vmatprep.subr.bf16.mxu0 0
      %1117 = vmatpush1.bf16.msra.mxu0 0
      %1118 = vmatprep.subr.bf16.mxu0 0
      %1119 = vmatpush1.bf16.msra.mxu0 0
      %1120 = vmatprep.subr.bf16.mxu0 0
      %1121 = vmatpush1.bf16.msra.mxu0 0
      %1122 = vmatprep.subr.bf16.mxu0 0
      %1123 = vmatpush1.bf16.msra.mxu0 0
      %1124 = vmatprep.subr.bf16.mxu0 0
      %1125 = vmatpush1.bf16.msra.mxu0 0
      %1126 = vmatprep.subr.bf16.mxu0 0
      %1127 = vmatpush1.bf16.msra.mxu0 0
      %1128 = vmatprep.subr.bf16.mxu0 0
      %1129 = vmatpush1.bf16.msra.mxu0 0
      %1130 = vmatprep.subr.bf16.mxu0 0
      %1131 = vmatpush1.bf16.msra.mxu0 0
      %1132 = vmatprep.subr.bf16.mxu0 0
      %1133 = vmatpush1.bf16.msra.mxu0 0
      %1134 = vmatprep.subr.bf16.mxu0 0
      %1135 = vmatpush1.bf16.msra.mxu0 0
      %1136 = vmatprep.subr.bf16.mxu0 0
      %1137 = vmatpush1.bf16.msra.mxu0 0
      %1138 = vmatprep.mubr.bf16.mxu0 0
      %1139 = vmatmul.mubr.bf16.gmra.mrb[0].mxu0 %v1098
      %v1140 = vpop.f32.mrb[0].mxu0
      %v1141 = vadd.f32 0.0, %v1140
      %v1142 = vpop.f32.mrb[0].mxu0
      %v1143 = vadd.f32 0.0, %v1142
      %v1144 = vpop.f32.mrb[0].mxu0
      %v1145 = vpop.f32.mrb[0].mxu0
      %1146 = vdwg.mxu0
      %v1148 = vsel %vm496, %v1084, 0
      %v1151 = vsel %vm500, %v1085, 0
      %v1154 = vsel %vm500, %v1086, 0
      %1156 = vmatprep.subr.bf16.mxu0 %v1154
      %1157 = vmatpush1.bf16.msra.mxu0 %v1151
      %1158 = vmatprep.subr.bf16.mxu0 0
      %1159 = vmatpush1.bf16.msra.mxu0 0
      %1160 = vmatprep.subr.bf16.mxu0 0
      %1161 = vmatpush1.bf16.msra.mxu0 0
      %1162 = vmatprep.subr.bf16.mxu0 0
      %1163 = vmatpush1.bf16.msra.mxu0 0
      %1164 = vmatprep.subr.bf16.mxu0 0
      %1165 = vmatpush1.bf16.msra.mxu0 0
      %1166 = vmatprep.subr.bf16.mxu0 0
      %1167 = vmatpush1.bf16.msra.mxu0 0
      %1168 = vmatprep.subr.bf16.mxu0 0
      %1169 = vmatpush1.bf16.msra.mxu0 0
      %1170 = vmatprep.subr.bf16.mxu0 0
      %1171 = vmatpush1.bf16.msra.mxu0 0
      %1172 = vmatprep.subr.bf16.mxu0 0
      %1173 = vmatpush1.bf16.msra.mxu0 0
      %1174 = vmatprep.subr.bf16.mxu0 0
      %1175 = vmatpush1.bf16.msra.mxu0 0
      %1176 = vmatprep.subr.bf16.mxu0 0
      %1177 = vmatpush1.bf16.msra.mxu0 0
      %1178 = vmatprep.subr.bf16.mxu0 0
      %1179 = vmatpush1.bf16.msra.mxu0 0
      %1180 = vmatprep.subr.bf16.mxu0 0
      %1181 = vmatpush1.bf16.msra.mxu0 0
      %1182 = vmatprep.subr.bf16.mxu0 0
      %1183 = vmatpush1.bf16.msra.mxu0 0
      %1184 = vmatprep.subr.bf16.mxu0 0
      %1185 = vmatpush1.bf16.msra.mxu0 0
      %1186 = vmatprep.subr.bf16.mxu0 0
      %1187 = vmatpush1.bf16.msra.mxu0 0
      %1188 = vmatprep.mubr.bf16.mxu0 0
      %1189 = vmatmul.mubr.bf16.gmra.mrb[0].mxu0 %v1148
      %v1190 = vpop.f32.mrb[0].mxu0
      %v1191 = vadd.f32 %v1141, %v1190
      %v1192 = vpop.f32.mrb[0].mxu0
      %v1193 = vadd.f32 %v1143, %v1192
      %v1194 = vpop.f32.mrb[0].mxu0
      %v1195 = vpop.f32.mrb[0].mxu0
      %1196 = vdwg.mxu0
      %1197 = vrot.lane.b32.xlu0 %v1081, 16
      %v1198 = vpop.permute.xlu0 %1197
      %1199 = vrot.lane.b32.xlu0 %v1082, 16
      %v1200 = vpop.permute.xlu0 %1199
      %vm1201 = vcmp.lt.s32.totalorder %v453, 16
      %v1202 = vsel %vm1201, %v1198, %v1200
      %v1203 = vsel %vm1201, %v1200, %v1198
      %s1204 = scalar_lea.vmem %s421, 44
      %v1205 = vld [vmem:[%s1204] sm:$0xf]
      %v1206 = vpack.c.bf16 %v1203, %v1203
      %v1207 = vpack.c.bf16 %v1202, %v1202
      %v1209 = vsel %vm496, %v1205, 0
      %v1212 = vsel %vm500, %v1206, 0
      %v1215 = vsel %vm500, %v1207, 0
      %1217 = vmatprep.subr.bf16.mxu0 %v1215
      %1218 = vmatpush1.bf16.msra.mxu0 %v1212
      %1219 = vmatprep.subr.bf16.mxu0 0
      %1220 = vmatpush1.bf16.msra.mxu0 0
      %1221 = vmatprep.subr.bf16.mxu0 0
      %1222 = vmatpush1.bf16.msra.mxu0 0
      %1223 = vmatprep.subr.bf16.mxu0 0
      %1224 = vmatpush1.bf16.msra.mxu0 0
      %1225 = vmatprep.subr.bf16.mxu0 0
      %1226 = vmatpush1.bf16.msra.mxu0 0
      %1227 = vmatprep.subr.bf16.mxu0 0
      %1228 = vmatpush1.bf16.msra.mxu0 0
      %1229 = vmatprep.subr.bf16.mxu0 0
      %1230 = vmatpush1.bf16.msra.mxu0 0
      %1231 = vmatprep.subr.bf16.mxu0 0
      %1232 = vmatpush1.bf16.msra.mxu0 0
      %1233 = vmatprep.subr.bf16.mxu0 0
      %1234 = vmatpush1.bf16.msra.mxu0 0
      %1235 = vmatprep.subr.bf16.mxu0 0
      %1236 = vmatpush1.bf16.msra.mxu0 0
      %1237 = vmatprep.subr.bf16.mxu0 0
      %1238 = vmatpush1.bf16.msra.mxu0 0
      %1239 = vmatprep.subr.bf16.mxu0 0
      %1240 = vmatpush1.bf16.msra.mxu0 0
      %1241 = vmatprep.subr.bf16.mxu0 0
      %1242 = vmatpush1.bf16.msra.mxu0 0
      %1243 = vmatprep.subr.bf16.mxu0 0
      %1244 = vmatpush1.bf16.msra.mxu0 0
      %1245 = vmatprep.subr.bf16.mxu0 0
      %1246 = vmatpush1.bf16.msra.mxu0 0
      %1247 = vmatprep.subr.bf16.mxu0 0
      %1248 = vmatpush1.bf16.msra.mxu0 0
      %1249 = vmatprep.mubr.bf16.mxu0 0
      %1250 = vmatmul.mubr.bf16.gmra.mrb[0].mxu0 %v1209
      %v1251 = vpop.f32.mrb[0].mxu0
      %v1252 = vadd.f32 0.0, %v1251
      %v1253 = vpop.f32.mrb[0].mxu0
      %v1254 = vadd.f32 0.0, %v1253
      %v1255 = vpop.f32.mrb[0].mxu0
      %v1256 = vpop.f32.mrb[0].mxu0
      %1257 = vdwg.mxu0
      %v1258 = vadd.f32 %v1191, %v1252
      %v1259 = vadd.f32 %v1193, %v1254
      %s1260 = scalar_lea.vmem %s426, 24
      %v1261 = vld [vmem:[%s1260] sm:$0xff]
      %1263 = vset.pattern.permute.xlu0 0
      %1264 = vperm.xlu0 %1263, %v1261
      %v1265 = vpop.permute.xlu0 %1264
      %v1267 = vadd.f32 %v1258, %v1265
      %v1268 = vadd.f32 %v1259, %v1265
      %vm1269 = vcmp.ge.s32.totalorder %v453, 16
      %vm1270 = vcmp.ge.s32.totalorder %v454, 16
      %v1271 = vsel %vm1269, 1, 0
      %v1272 = vsel %vm1270, 1, 0
      %vm1273 = vcmp.eq.s32.totalorder %v1271, 1
      %vm1274 = vcmp.eq.s32.totalorder %v1272, 1
      %v1275 = vsel %vm1273, %v1267, 0.0
      %v1276 = vsel %vm1274, %v1268, 0.0
      %v1277 = vtanh.pop %v1275
      %v1278 = vtanh.pop %v1276
      %v1279 = vadd.f32 %v1277, %v1081
      %v1280 = vadd.f32 %v1278, %v1082
      %v1281 = vadd.f32 %v1279, %v449
      %v1282 = vadd.f32 %v1280, %v450
      %v1283 = vld [vmem:[%s430] sm:$0xff]
      %1285 = vset.pattern.permute.xlu0 0
      %1286 = vperm.xlu0 %1285, %v1283
      %v1287 = vpop.permute.xlu0 %1286
      %v1289 = vmul.f32 %v1281, %v1287
      %v1290 = vmul.f32 %v1282, %v1287
      %v1291 = vrot.slane %v1289, 4
      %v1292 = vadd.f32 %v1289, %v1291
      %v1293 = vrot.slane %v1292, 2
      %v1294 = vadd.f32 %v1292, %v1293
      %v1295 = vrot.slane %v1294, 1
      %v1296 = vadd.f32 %v1294, %v1295
      %v1297 = vrot.slane %v1290, 4
      %v1298 = vadd.f32 %v1290, %v1297
      %v1299 = vrot.slane %v1298, 2
      %v1300 = vadd.f32 %v1298, %v1299
      %v1301 = vrot.slane %v1300, 1
      %v1302 = vadd.f32 %v1300, %v1301
      %v1303 = vld [vmem:[%s433] sm:$0x1]
      %1305 = vset.pattern.permute.xlu0 0
      %1306 = vperm.xlu0 %1305, %v1303
      %v1307 = vpop.permute.xlu0 %1306
      %v1309 = vlaneseq
      %v1310 = vshrl.u32 %v1309, 7
      %v1311 = vsub.s32 0, %v1310
      %v1312 = vrot.slane %v1307, %v1311
      %v1313 = vadd.f32 %v1296, %v1312
      %v1314 = vadd.f32 %v1302, %v1312
      %v1315 = vadd.f32 %v1313, %v465
      %v1316 = vadd.f32 %v1314, %v469
      %v1319 = vcombine.low %v1315, %v1316
      %v1321 = vunpack.c.l.s4 1966171168
      %v1322 = vunpack.c.0.s8 %v1321
      %v1323 = vlaneseq
      %v1324 = vshrl.u32 %v1323, 7
      %v1325 = vsub.s32 %v1322, %v1324
      %v1326 = vrot.slane %v1319, %v1325
      %v1328 = vunpack.c.l.s4 1966171168
      %v1329 = vunpack.c.0.s8 %v1328
      %v1330 = vlaneseq
      %v1331 = vshrl.u32 %v1330, 7
      %v1332 = vsub.s32 %v1329, %v1331
      %v1333 = vrot.slane %v1326, %v1332
      %v1335 = vlaneseq
      %vm1336 = vcmp.ge.s32.totalorder %v1335, 0
      %vm1337 = vcmp.lt.s32.totalorder %v1335, 256
      %vm1338 = vmand %vm1336, %vm1337
      %1339 = vst.msk [vmem:[%s437] sm:$0x3] %vm1338, %v1333
      %p1340 = scmp.lt.s32.totalorder %s23, 1
      %s1341 = scalar_select %p1340, %s23, 1
      %s1342 = smul.addr %s1341, 2
      %s1343 = scalar_lea.vmem %s8, %s1342
      // Predicated region
      $region57: #{filter_forward.1} parent=51 // pred_check
        %p1344 = pneg %p257
      $region58: #{filter_forward.1} parent=51 // pred_check_branch
        %1346 = sbr.rel (%p1344) target = $region60
      $region59: #{filter_forward.1} parent=51 // pred_region
        _
      $region60: #{filter_forward.1} parent=51 // pred_fallthru
        _
    $region52: #{filter_forward.1} parent=5 // pred_fallthru
      _
    %p1347 = scmp.le.s32.totalorder 2, %s14
    // Predicated region
    $region61: #{filter_forward.1} parent=5 // pred_check
      %p1348 = pneg %p1347
    $region62: #{filter_forward.1} parent=5 // pred_check_branch
      %1350 = sbr.rel (%p1348) target = $region64
    $region63: #{filter_forward.1} parent=5 // pred_region
      %s1351 = ssub.s32 %s14, 2
      // Predicated region
      $region65: #{filter_forward.1} parent=63 // pred_check
        %p1352 = pneg %p263
      $region66: #{filter_forward.1} parent=63 // pred_check_branch
        %1354 = sbr.rel (%p1352) target = $region68
      $region67: #{filter_forward.1} parent=63 // pred_region
        %p1355 = scmp.lt.s32.totalorder %s25, 1
        %s1356 = scalar_select %p1355, %s25, 1
        %s1357 = smul.addr %s1356, 2
        %s1358 = scalar_lea.vmem %s8, %s1357
      $region68: #{filter_forward.1} parent=63 // pred_fallthru
        _
    $region64: #{filter_forward.1} parent=5 // pred_fallthru
      _
  $region6: #{filter_forward.1} parent=0 // loop_footer
    %s18 = sadd.s32 1, %s14
  $region7: #{filter_forward.1} parent=0 // loop_footer_branch
    %13 = sbr.rel target = $region3
  $region8: #{filter_forward.1} parent=0 // loop_exit
    _

</llo_original>
